<compile_context>
chip_gen: v5e
topology: v5e:2x2
jax: 0.10.0
libtpu: 0.0.40
codegen_flags: <defaults>
</compile_context>

<pallas_src>
import functools
import math

import jax
import jax.numpy as jnp
from jax import lax
from jax.experimental import pallas as pl
from jax.experimental.pallas import tpu as pltpu


def _gelu_exact(x):
    # nn.GELU() default = exact erf-based GELU (kept for bit-level parity with
    # the PyTorch module). The tanh approximation would route through the EUP
    # and is cheaper, but changes numerics vs the reference.
    return 0.5 * x * (1.0 + lax.erf(x * (1.0 / math.sqrt(2.0))))


def _linear_block_kernel(x_ref, w1_ref, b1_ref, w2_ref, b2_ref, o_ref, h_acc):
    k = pl.program_id(1)

    @pl.when(k == 0)
    def _init():
        h_acc[...] = jnp.zeros_like(h_acc)

    # Layer-1 partial product: (bm, bk) @ (bk, Din_p), f32 accumulation on the
    # MXU. Operands stay in their native dtype (bf16 runs at full MXU rate).
    h_acc[...] += jnp.dot(x_ref[...], w1_ref[...],
                          preferred_element_type=jnp.float32)

    @pl.when(k == pl.num_programs(1) - 1)
    def _finalize():
        h = _gelu_exact(h_acc[...] + b1_ref[...].astype(jnp.float32))
        # Dropout is identity in eval mode.
        # TODO(synk): training-mode dropout would use pltpu.prng_seed/prng_random_bits.
        y = jnp.dot(h.astype(w2_ref.dtype), w2_ref[...],
                    preferred_element_type=jnp.float32)
        y = _gelu_exact(y + b2_ref[...].astype(jnp.float32))
        o_ref[...] = y.astype(o_ref.dtype)


def _round_up(n, m):
    return (n + m - 1) // m * m


@functools.partial(jax.jit, static_argnames=("block_m",))
def linear_block(x, w1, b1, w2, b2, *, block_m=256):
    """x: (..., Din); w1: (Din, Din); b1: (Din,); w2: (Din, Dout); b2: (Dout,)."""
    din, dout = w1.shape[0], w2.shape[1]
    assert w1.shape == (din, din) and w2.shape == (din, dout)
    assert b1.shape == (din,) and b2.shape == (dout,)
    assert x.shape[-1] == din

    lead_shape = x.shape[:-1]
    x2 = x.reshape(-1, din)
    m = x2.shape[0]

    # Lane-dense feature dims: pad Din/Dout up to multiples of 128. Zero
    # padding is exact: padded h columns are GELU(0+0)=0, padded w2 rows
    # contribute nothing, padded output columns are sliced off.
    din_p = _round_up(din, 128)
    dout_p = _round_up(dout, 128)

    # Large M tile (clamped so tiny batches don't over-pad); pad M instead of
    # asserting divisibility.
    assert block_m % 8 == 0
    block_m = min(block_m, _round_up(m, 128))
    m_pad = _round_up(m, block_m)

    # K tile for the layer-1 reduction (w1 is streamed in (block_k, Din_p)
    # slices rather than fully resident). din_p is always a multiple of 128.
    block_k = 512 if din_p % 512 == 0 else (256 if din_p % 256 == 0 else 128)

    x2p = jnp.pad(x2, ((0, m_pad - m), (0, din_p - din)))
    w1p = jnp.pad(w1, ((0, din_p - din), (0, din_p - din)))
    b1p = jnp.pad(b1, ((0, din_p - din),)).reshape(1, din_p)
    w2p = jnp.pad(w2, ((0, din_p - din), (0, dout_p - dout)))
    b2p = jnp.pad(b2, ((0, dout_p - dout),)).reshape(1, dout_p)

    grid = (m_pad // block_m, din_p // block_k)

    # VMEM budget (double-buffered tiles + f32 accumulator) -> scoped limit.
    est = (
        2 * block_m * block_k * x2p.dtype.itemsize        # x tiles
        + 2 * block_k * din_p * w1p.dtype.itemsize        # w1 K-slices
        + 2 * din_p * b1p.dtype.itemsize                  # b1
        + 2 * din_p * dout_p * w2p.dtype.itemsize         # w2 (resident)
        + 2 * dout_p * b2p.dtype.itemsize                 # b2
        + 2 * block_m * dout_p * x.dtype.itemsize         # out tiles
        + block_m * din_p * 4                             # h accumulator scratch
        + block_m * (din_p + dout_p) * 4                  # f32 temporaries
    )
    vmem_limit = int(min(64 << 20, max(est + (4 << 20), 16 << 20)))
    # TODO(synk): for large Din/Dout the resident w2 block should be tiled over
    # an N grid axis (or layer 2 moved to a second pallas_call) so the kernel
    # also fits v7x's 64 MiB VMEM; resident w2 is fine at the dims used here.

    flops = 2 * m_pad * din_p * (din_p + dout_p)
    transcendentals = m_pad * (din_p + dout_p)            # one erf per GELU element
    bytes_accessed = (
        x2p.size * x2p.dtype.itemsize
        + w1p.size * w1p.dtype.itemsize + b1p.size * b1p.dtype.itemsize
        + w2p.size * w2p.dtype.itemsize + b2p.size * b2p.dtype.itemsize
        + m_pad * dout_p * x.dtype.itemsize
    )

    out = pl.pallas_call(
        _linear_block_kernel,
        out_shape=jax.ShapeDtypeStruct((m_pad, dout_p), x.dtype),
        grid_spec=pltpu.PrefetchScalarGridSpec(
            num_scalar_prefetch=0,
            grid=grid,
            in_specs=[
                pl.BlockSpec((block_m, block_k), lambda i, k: (i, k)),   # x tile
                pl.BlockSpec((block_k, din_p), lambda i, k: (k, 0)),     # w1 K-slice
                pl.BlockSpec((1, din_p), lambda i, k: (0, 0)),           # b1
                pl.BlockSpec((din_p, dout_p), lambda i, k: (0, 0)),      # w2 (resident)
                pl.BlockSpec((1, dout_p), lambda i, k: (0, 0)),          # b2
            ],
            out_specs=pl.BlockSpec((block_m, dout_p), lambda i, k: (i, 0)),
            scratch_shapes=[pltpu.VMEM((block_m, din_p), jnp.float32)],
        ),
        compiler_params=pltpu.CompilerParams(
            dimension_semantics=("parallel", "arbitrary"),
            vmem_limit_bytes=vmem_limit,
        ),
        cost_estimate=pl.CostEstimate(
            flops=flops,
            transcendentals=transcendentals,
            bytes_accessed=bytes_accessed,
        ),
    )(x2p, w1p, b1p, w2p, b2p)

    return out[:m, :dout].reshape(*lead_shape, dout)


def _reference(x, w1, b1, w2, b2):
    h = jax.nn.gelu(x @ w1 + b1, approximate=False)
    return jax.nn.gelu(h @ w2 + b2, approximate=False)


if __name__ == "__main__":
    key = jax.random.PRNGKey(0)
    k_x, k_w1, k_b1, k_w2, k_b2, k_big = jax.random.split(key, 6)

    # Small shapes consistent with the module: tokens of dim input_dim.
    batch, seq, input_dim, output_dim = 2, 8, 32, 16
    x = jax.random.normal(k_x, (batch, seq, input_dim), dtype=jnp.float32)

    # PyTorch-Linear-style init (uniform in +-1/sqrt(fan_in)), stored (in, out).
    bound = 1.0 / math.sqrt(input_dim)
    w1 = jax.random.uniform(k_w1, (input_dim, input_dim), jnp.float32, -bound, bound)
    b1 = jax.random.uniform(k_b1, (input_dim,), jnp.float32, -bound, bound)
    w2 = jax.random.uniform(k_w2, (input_dim, output_dim), jnp.float32, -bound, bound)
    b2 = jax.random.uniform(k_b2, (output_dim,), jnp.float32, -bound, bound)

    out = jax.block_until_ready(linear_block(x, w1, b1, w2, b2))
    ref = _reference(x, w1, b1, w2, b2)
    assert out.shape == (batch, seq, output_dim)
    assert jnp.allclose(out, ref, atol=2e-5, rtol=2e-5), "mismatch vs reference (small)"

    # Second check at a multi-tile, non-multiple-of-128 size to exercise the
    # M/K grid, padding and slicing paths.
    kk = jax.random.split(k_big, 5)
    m2, din2, dout2 = 600, 384, 96
    b2_bound = 1.0 / math.sqrt(din2)
    x_l = jax.random.normal(kk[0], (m2, din2), dtype=jnp.float32)
    w1_l = jax.random.uniform(kk[1], (din2, din2), jnp.float32, -b2_bound, b2_bound)
    b1_l = jax.random.uniform(kk[2], (din2,), jnp.float32, -b2_bound, b2_bound)
    w2_l = jax.random.uniform(kk[3], (din2, dout2), jnp.float32, -b2_bound, b2_bound)
    b2_l = jax.random.uniform(kk[4], (dout2,), jnp.float32, -b2_bound, b2_bound)
    out_l = jax.block_until_ready(linear_block(x_l, w1_l, b1_l, w2_l, b2_l))
    ref_l = _reference(x_l, w1_l, b1_l, w2_l, b2_l)
    assert out_l.shape == (m2, dout2)
    assert jnp.allclose(out_l, ref_l, atol=1e-4, rtol=1e-4), "mismatch vs reference (tiled)"

    print("KERNEL_OK")
</pallas_src>

<mosaic_0001>
module attributes {stable_mosaic.version = 11 : i64} {
  func.func @_linear_block_kernel(%arg0: i32, %arg1: i32, %arg2: memref<128x128xf32, #tpu.memory_space<vmem>>, %arg3: memref<128x128xf32, #tpu.memory_space<vmem>>, %arg4: memref<1x128xf32, #tpu.memory_space<vmem>>, %arg5: memref<128x128xf32, #tpu.memory_space<vmem>>, %arg6: memref<1x128xf32, #tpu.memory_space<vmem>>, %arg7: memref<128x128xf32, #tpu.memory_space<vmem>>, %arg8: memref<128x128xf32, #tpu.memory_space<vmem>>) attributes {dimension_semantics = [#tpu.dimension_semantics<parallel>, #tpu.dimension_semantics<arbitrary>], iteration_bounds = array<i64: 1, 1>, scalar_prefetch = 0 : i64, scratch_operands = 1 : i64, tpu.core_type = #tpu.core_type<tc>, window_params = [{transform_indices = @transform_0, window_bounds = array<i64: 128, 128>}, {transform_indices = @transform_1, window_bounds = array<i64: 128, 128>}, {pipeline_mode = #tpu.pipeline_mode<synchronous>, transform_indices = @transform_2, window_bounds = array<i64: 1, 128>}, {pipeline_mode = #tpu.pipeline_mode<synchronous>, transform_indices = @transform_3, window_bounds = array<i64: 128, 128>}, {pipeline_mode = #tpu.pipeline_mode<synchronous>, transform_indices = @transform_4, window_bounds = array<i64: 1, 128>}, {transform_indices = @transform_5, window_bounds = array<i64: 128, 128>}]} {
    %c0_i32 = arith.constant 0 : i32
    %0 = arith.cmpi eq, %arg1, %c0_i32 : i32
    %1 = arith.extui %0 : i1 to i32
    %c0_i32_0 = arith.constant 0 : i32
    %2 = arith.cmpi ne, %1, %c0_i32_0 : i32
    scf.if %2 {
      %cst_10 = arith.constant 0.000000e+00 : f32
      %12 = vector.broadcast %cst_10 : f32 to vector<128x128xf32>
      %c0_11 = arith.constant 0 : index
      %c0_12 = arith.constant 0 : index
      %13 = vector.load %arg8[%c0_11, %c0_12] : memref<128x128xf32, #tpu.memory_space<vmem>>, vector<128x128xf32>
      tpu.vector_store %arg8[%c0_11, %c0_12], %12 {strides = array<i32>} : memref<128x128xf32, #tpu.memory_space<vmem>>, vector<128x128xf32>,
    } else {
    }
    %c0 = arith.constant 0 : index
    %c0_1 = arith.constant 0 : index
    %3 = vector.load %arg8[%c0, %c0_1] : memref<128x128xf32, #tpu.memory_space<vmem>>, vector<128x128xf32>
    %c0_2 = arith.constant 0 : index
    %c0_3 = arith.constant 0 : index
    %4 = vector.load %arg2[%c0_2, %c0_3] : memref<128x128xf32, #tpu.memory_space<vmem>>, vector<128x128xf32>
    %c0_4 = arith.constant 0 : index
    %c0_5 = arith.constant 0 : index
    %5 = vector.load %arg3[%c0_4, %c0_5] : memref<128x128xf32, #tpu.memory_space<vmem>>, vector<128x128xf32>
    %cst = arith.constant dense<0.000000e+00> : vector<128x128xf32>
    %6 = tpu.matmul %4, %5, %cst {dimension_numbers = #tpu.dot_dimension_numbers<[1], [0], [0], [1], [0, 0, 1, 1], [], []>} : vector<128x128xf32>, vector<128x128xf32>, vector<128x128xf32> -> vector<128x128xf32>
    %7 = arith.addf %3, %6 : vector<128x128xf32>
    %c0_6 = arith.constant 0 : index
    %c0_7 = arith.constant 0 : index
    %8 = vector.load %arg8[%c0_6, %c0_7] : memref<128x128xf32, #tpu.memory_space<vmem>>, vector<128x128xf32>
    tpu.vector_store %arg8[%c0_6, %c0_7], %7 {strides = array<i32>} : memref<128x128xf32, #tpu.memory_space<vmem>>, vector<128x128xf32>,
    %c0_i32_8 = arith.constant 0 : i32
    %9 = arith.cmpi eq, %arg1, %c0_i32_8 : i32
    %10 = arith.extui %9 : i1 to i32
    %c0_i32_9 = arith.constant 0 : i32
    %11 = arith.cmpi ne, %10, %c0_i32_9 : i32
    scf.if %11 {
      %c0_10 = arith.constant 0 : index
      %c0_11 = arith.constant 0 : index
      %12 = vector.load %arg8[%c0_10, %c0_11] : memref<128x128xf32, #tpu.memory_space<vmem>>, vector<128x128xf32>
      %c0_12 = arith.constant 0 : index
      %c0_13 = arith.constant 0 : index
      %13 = vector.load %arg4[%c0_12, %c0_13] : memref<1x128xf32, #tpu.memory_space<vmem>>, vector<1x128xf32>
      %14 = vector.broadcast %13 : vector<1x128xf32> to vector<128x128xf32>
      %15 = arith.addf %12, %14 : vector<128x128xf32>
      %cst_14 = arith.constant 5.000000e-01 : f32
      %16 = vector.broadcast %cst_14 : f32 to vector<128x128xf32>
      %17 = arith.mulf %16, %15 : vector<128x128xf32>
      %cst_15 = arith.constant 0.707106769 : f32
      %18 = vector.broadcast %cst_15 : f32 to vector<128x128xf32>
      %19 = arith.mulf %15, %18 : vector<128x128xf32>
      %20 = math.erf %19 : vector<128x128xf32>
      %cst_16 = arith.constant 1.000000e+00 : f32
      %21 = vector.broadcast %cst_16 : f32 to vector<128x128xf32>
      %22 = arith.addf %21, %20 : vector<128x128xf32>
      %23 = arith.mulf %17, %22 : vector<128x128xf32>
      %c0_17 = arith.constant 0 : index
      %c0_18 = arith.constant 0 : index
      %24 = vector.load %arg5[%c0_17, %c0_18] : memref<128x128xf32, #tpu.memory_space<vmem>>, vector<128x128xf32>
      %cst_19 = arith.constant dense<0.000000e+00> : vector<128x128xf32>
      %25 = tpu.matmul %23, %24, %cst_19 {dimension_numbers = #tpu.dot_dimension_numbers<[1], [0], [0], [1], [0, 0, 1, 1], [], []>} : vector<128x128xf32>, vector<128x128xf32>, vector<128x128xf32> -> vector<128x128xf32>
      %c0_20 = arith.constant 0 : index
      %c0_21 = arith.constant 0 : index
      %26 = vector.load %arg6[%c0_20, %c0_21] : memref<1x128xf32, #tpu.memory_space<vmem>>, vector<1x128xf32>
      %27 = vector.broadcast %26 : vector<1x128xf32> to vector<128x128xf32>
      %28 = arith.addf %25, %27 : vector<128x128xf32>
      %cst_22 = arith.constant 5.000000e-01 : f32
      %29 = vector.broadcast %cst_22 : f32 to vector<128x128xf32>
      %30 = arith.mulf %29, %28 : vector<128x128xf32>
      %cst_23 = arith.constant 0.707106769 : f32
      %31 = vector.broadcast %cst_23 : f32 to vector<128x128xf32>
      %32 = arith.mulf %28, %31 : vector<128x128xf32>
      %33 = math.erf %32 : vector<128x128xf32>
      %cst_24 = arith.constant 1.000000e+00 : f32
      %34 = vector.broadcast %cst_24 : f32 to vector<128x128xf32>
      %35 = arith.addf %34, %33 : vector<128x128xf32>
      %36 = arith.mulf %30, %35 : vector<128x128xf32>
      %c0_25 = arith.constant 0 : index
      %c0_26 = arith.constant 0 : index
      %37 = vector.load %arg7[%c0_25, %c0_26] : memref<128x128xf32, #tpu.memory_space<vmem>>, vector<128x128xf32>
      tpu.vector_store %arg7[%c0_25, %c0_26], %36 {strides = array<i32>} : memref<128x128xf32, #tpu.memory_space<vmem>>, vector<128x128xf32>,
    } else {
    }
    return
  }
  func.func @transform_0(%arg0: i32, %arg1: i32) -> (i32, i32) {
    %c0_i32 = arith.constant 0 : i32
    return %arg0, %arg1 : i32, i32
  }
  func.func @transform_1(%arg0: i32, %arg1: i32) -> (i32, i32) {
    %c0_i32 = arith.constant 0 : i32
    %c0_i32_0 = arith.constant 0 : i32
    return %arg1, %c0_i32 : i32, i32
  }
  func.func @transform_2(%arg0: i32, %arg1: i32) -> (i32, i32) {
    %c0_i32 = arith.constant 0 : i32
    %c0_i32_0 = arith.constant 0 : i32
    %c0_i32_1 = arith.constant 0 : i32
    return %c0_i32, %c0_i32_0 : i32, i32
  }
  func.func @transform_3(%arg0: i32, %arg1: i32) -> (i32, i32) {
    %c0_i32 = arith.constant 0 : i32
    %c0_i32_0 = arith.constant 0 : i32
    %c0_i32_1 = arith.constant 0 : i32
    return %c0_i32, %c0_i32_0 : i32, i32
  }
  func.func @transform_4(%arg0: i32, %arg1: i32) -> (i32, i32) {
    %c0_i32 = arith.constant 0 : i32
    %c0_i32_0 = arith.constant 0 : i32
    %c0_i32_1 = arith.constant 0 : i32
    return %c0_i32, %c0_i32_0 : i32, i32
  }
  func.func @transform_5(%arg0: i32, %arg1: i32) -> (i32, i32) {
    %c0_i32 = arith.constant 0 : i32
    %c0_i32_0 = arith.constant 0 : i32
    return %arg0, %c0_i32 : i32, i32
  }
}

</mosaic_0001>

<llo_original>
// kernel: linear_block.1
$region0: #{linear_block.1}
  #allocation0 [shape = 'u32[]', space=smem, size = 0x4, offset = 0x4, fixed_abs, tag = 'smem constant byte address 0x4 - core index']
  #allocation1 [shape = 'u32[72,128]{1,0:T(1,128)}', space=vmem, size = 0x9000, scoped, tag = 'internal scratch']
  #allocation2 [shape = 'f32[128,128]{1,0:T(8,128)}', space=vmem, size = 0x10000, scoped, tag = 'scratch operand']
  %s0 = inlined_call_operand.vmem [shape: f32[128,128], index: 0, kind: input, shape index: {}]
  %s1 = inlined_call_operand.vmem [shape: f32[128,128], index: 1, kind: input, shape index: {}]
  %s2 = inlined_call_operand.vmem [shape: f32[1,128], index: 2, kind: input, shape index: {}]
  %s3 = inlined_call_operand.vmem [shape: f32[128,128], index: 3, kind: input, shape index: {}]
  %s4 = inlined_call_operand.vmem [shape: f32[1,128], index: 4, kind: input, shape index: {}]
  %s5 = inlined_call_operand.vmem [shape: f32[128,128], index: 5, kind: output, shape index: {}]
  %s6 = sld [smem:[#allocation0]]
  $region38: #{linear_block.1} parent=0
    _
  %s8 = ssub.s32 1, %s6
  %s9 = scalar_select 0, %s8, %s6
  // Predicated region
  $region2: #{linear_block.1} parent=0 // pred_check
    _
  $region3: #{linear_block.1} parent=0 // pred_check_branch
    %11 = sbr.rel (0) target = $region5
  $region4: #{linear_block.1} parent=0 // pred_region
    _
  $region5: #{linear_block.1} parent=0 // pred_fallthru
    _
  // Predicated region
  $region6: #{linear_block.1} parent=0 // pred_check
    _
  $region7: #{linear_block.1} parent=0 // pred_check_branch
    %13 = sbr.rel (0) target = $region9
  $region8: #{linear_block.1} parent=0 // pred_region
    _
  $region9: #{linear_block.1} parent=0 // pred_fallthru
    _
  // Predicated region
  $region10: #{linear_block.1} parent=0 // pred_check
    _
  $region11: #{linear_block.1} parent=0 // pred_check_branch
    %15 = sbr.rel (0) target = $region13
  $region12: #{linear_block.1} parent=0 // pred_region
    _
  $region13: #{linear_block.1} parent=0 // pred_fallthru
    _
  // Predicated region
  $region14: #{linear_block.1} parent=0 // pred_check
    _
  $region15: #{linear_block.1} parent=0 // pred_check_branch
    %17 = sbr.rel (0) target = $region17
  $region16: #{linear_block.1} parent=0 // pred_region
    _
  $region17: #{linear_block.1} parent=0 // pred_fallthru
    _
  // Predicated region
  $region18: #{linear_block.1} parent=0 // pred_check
    _
  $region19: #{linear_block.1} parent=0 // pred_check_branch
    %19 = sbr.rel (0) target = $region21
  $region20: #{linear_block.1} parent=0 // pred_region
    _
  $region21: #{linear_block.1} parent=0 // pred_fallthru
    _
  %p20 = scmp.eq.s32.totalorder 0, 0
  // Predicated region
  $region22: #{linear_block.1} parent=0 // pred_check
    %p21 = pneg %p20
  $region23: #{linear_block.1} parent=0 // pred_check_branch
    %23 = sbr.rel (%p21) target = $region25
  $region24: #{linear_block.1} parent=0 // pred_region
    %24 = vst [vmem:[#allocation2] sm:$0xff] 0.0
    %25 = vst [vmem:[#allocation2 + $0x8] sm:$0xff] 0.0
    %26 = vst [vmem:[#allocation2 + $0x10] sm:$0xff] 0.0
    %27 = vst [vmem:[#allocation2 + $0x18] sm:$0xff] 0.0
    %28 = vst [vmem:[#allocation2 + $0x20] sm:$0xff] 0.0
    %29 = vst [vmem:[#allocation2 + $0x28] sm:$0xff] 0.0
    %30 = vst [vmem:[#allocation2 + $0x30] sm:$0xff] 0.0
    %31 = vst [vmem:[#allocation2 + $0x38] sm:$0xff] 0.0
    %32 = vst [vmem:[#allocation2 + $0x40] sm:$0xff] 0.0
    %33 = vst [vmem:[#allocation2 + $0x48] sm:$0xff] 0.0
    %34 = vst [vmem:[#allocation2 + $0x50] sm:$0xff] 0.0
    %35 = vst [vmem:[#allocation2 + $0x58] sm:$0xff] 0.0
    %36 = vst [vmem:[#allocation2 + $0x60] sm:$0xff] 0.0
    %37 = vst [vmem:[#allocation2 + $0x68] sm:$0xff] 0.0
    %38 = vst [vmem:[#allocation2 + $0x70] sm:$0xff] 0.0
    %39 = vst [vmem:[#allocation2 + $0x78] sm:$0xff] 0.0
  $region25: #{linear_block.1} parent=0 // pred_fallthru
    _
  %v40 = vld [vmem:[#allocation2] sm:$0xff]
  %v41 = vld [vmem:[#allocation2 + $0x8] sm:$0xff]
  %v42 = vld [vmem:[#allocation2 + $0x10] sm:$0xff]
  %v43 = vld [vmem:[#allocation2 + $0x18] sm:$0xff]
  %v44 = vld [vmem:[#allocation2 + $0x20] sm:$0xff]
  %v45 = vld [vmem:[#allocation2 + $0x28] sm:$0xff]
  %v46 = vld [vmem:[#allocation2 + $0x30] sm:$0xff]
  %v47 = vld [vmem:[#allocation2 + $0x38] sm:$0xff]
  %v48 = vld [vmem:[#allocation2 + $0x40] sm:$0xff]
  %v49 = vld [vmem:[#allocation2 + $0x48] sm:$0xff]
  %v50 = vld [vmem:[#allocation2 + $0x50] sm:$0xff]
  %v51 = vld [vmem:[#allocation2 + $0x58] sm:$0xff]
  %v52 = vld [vmem:[#allocation2 + $0x60] sm:$0xff]
  %v53 = vld [vmem:[#allocation2 + $0x68] sm:$0xff]
  %v54 = vld [vmem:[#allocation2 + $0x70] sm:$0xff]
  %v55 = vld [vmem:[#allocation2 + $0x78] sm:$0xff]
  %v56 = vld [vmem:[%s0] sm:$0xff]
  %v57 = vld [vmem:[%s0 + $0x8] sm:$0xff]
  %v58 = vld [vmem:[%s0 + $0x10] sm:$0xff]
  %v59 = vld [vmem:[%s0 + $0x18] sm:$0xff]
  %v60 = vld [vmem:[%s0 + $0x20] sm:$0xff]
  %v61 = vld [vmem:[%s0 + $0x28] sm:$0xff]
  %v62 = vld [vmem:[%s0 + $0x30] sm:$0xff]
  %v63 = vld [vmem:[%s0 + $0x38] sm:$0xff]
  %v64 = vld [vmem:[%s0 + $0x40] sm:$0xff]
  %v65 = vld [vmem:[%s0 + $0x48] sm:$0xff]
  %v66 = vld [vmem:[%s0 + $0x50] sm:$0xff]
  %v67 = vld [vmem:[%s0 + $0x58] sm:$0xff]
  %v68 = vld [vmem:[%s0 + $0x60] sm:$0xff]
  %v69 = vld [vmem:[%s0 + $0x68] sm:$0xff]
  %v70 = vld [vmem:[%s0 + $0x70] sm:$0xff]
  %v71 = vld [vmem:[%s0 + $0x78] sm:$0xff]
  %v72 = vld [vmem:[%s1] sm:$0xff]
  %v73 = vld [vmem:[%s1 + $0x8] sm:$0xff]
  %v74 = vld [vmem:[%s1 + $0x10] sm:$0xff]
  %v75 = vld [vmem:[%s1 + $0x18] sm:$0xff]
  %v76 = vld [vmem:[%s1 + $0x20] sm:$0xff]
  %v77 = vld [vmem:[%s1 + $0x28] sm:$0xff]
  %v78 = vld [vmem:[%s1 + $0x30] sm:$0xff]
  %v79 = vld [vmem:[%s1 + $0x38] sm:$0xff]
  %v80 = vld [vmem:[%s1 + $0x40] sm:$0xff]
  %v81 = vld [vmem:[%s1 + $0x48] sm:$0xff]
  %v82 = vld [vmem:[%s1 + $0x50] sm:$0xff]
  %v83 = vld [vmem:[%s1 + $0x58] sm:$0xff]
  %v84 = vld [vmem:[%s1 + $0x60] sm:$0xff]
  %v85 = vld [vmem:[%s1 + $0x68] sm:$0xff]
  %v86 = vld [vmem:[%s1 + $0x70] sm:$0xff]
  %v87 = vld [vmem:[%s1 + $0x78] sm:$0xff]
  %88 = vmatpush.msra.mxu0 %v87
  %89 = vmatpush.msra.mxu0 %v86
  %90 = vmatpush.msra.mxu0 %v85
  %91 = vmatpush.msra.mxu0 %v84
  %92 = vmatpush.msra.mxu0 %v83
  %93 = vmatpush.msra.mxu0 %v82
  %94 = vmatpush.msra.mxu0 %v81
  %95 = vmatpush.msra.mxu0 %v80
  %96 = vmatpush.msra.mxu0 %v79
  %97 = vmatpush.msra.mxu0 %v78
  %98 = vmatpush.msra.mxu0 %v77
  %99 = vmatpush.msra.mxu0 %v76
  %100 = vmatpush.msra.mxu0 %v75
  %101 = vmatpush.msra.mxu0 %v74
  %102 = vmatpush.msra.mxu0 %v73
  %103 = vmatpush.msra.mxu0 %v72
  %104 = vmatmul.f32.gmra.mxu0 %v56
  %v105 = vpop.f32.mrf.mxu0
  %v106 = vadd.f32 0.0, %v105
  %107 = vmatmul.f32.gmra.mxu0 %v57
  %v108 = vpop.f32.mrf.mxu0
  %v109 = vadd.f32 0.0, %v108
  %110 = vmatmul.f32.gmra.mxu0 %v58
  %v111 = vpop.f32.mrf.mxu0
  %v112 = vadd.f32 0.0, %v111
  %113 = vmatmul.f32.gmra.mxu0 %v59
  %v114 = vpop.f32.mrf.mxu0
  %v115 = vadd.f32 0.0, %v114
  %116 = vmatmul.f32.gmra.mxu0 %v60
  %v117 = vpop.f32.mrf.mxu0
  %v118 = vadd.f32 0.0, %v117
  %119 = vmatmul.f32.gmra.mxu0 %v61
  %v120 = vpop.f32.mrf.mxu0
  %v121 = vadd.f32 0.0, %v120
  %122 = vmatmul.f32.gmra.mxu0 %v62
  %v123 = vpop.f32.mrf.mxu0
  %v124 = vadd.f32 0.0, %v123
  %125 = vmatmul.f32.gmra.mxu0 %v63
  %v126 = vpop.f32.mrf.mxu0
  %v127 = vadd.f32 0.0, %v126
  %128 = vmatmul.f32.gmra.mxu0 %v64
  %v129 = vpop.f32.mrf.mxu0
  %v130 = vadd.f32 0.0, %v129
  %131 = vmatmul.f32.gmra.mxu0 %v65
  %v132 = vpop.f32.mrf.mxu0
  %v133 = vadd.f32 0.0, %v132
  %134 = vmatmul.f32.gmra.mxu0 %v66
  %v135 = vpop.f32.mrf.mxu0
  %v136 = vadd.f32 0.0, %v135
  %137 = vmatmul.f32.gmra.mxu0 %v67
  %v138 = vpop.f32.mrf.mxu0
  %v139 = vadd.f32 0.0, %v138
  %140 = vmatmul.f32.gmra.mxu0 %v68
  %v141 = vpop.f32.mrf.mxu0
  %v142 = vadd.f32 0.0, %v141
  %143 = vmatmul.f32.gmra.mxu0 %v69
  %v144 = vpop.f32.mrf.mxu0
  %v145 = vadd.f32 0.0, %v144
  %146 = vmatmul.f32.gmra.mxu0 %v70
  %v147 = vpop.f32.mrf.mxu0
  %v148 = vadd.f32 0.0, %v147
  %149 = vmatmul.f32.gmra.mxu0 %v71
  %v150 = vpop.f32.mrf.mxu0
  %v151 = vadd.f32 0.0, %v150
  %152 = vdwg.mxu0
  %v153 = vadd.f32 %v40, %v106
  %v154 = vadd.f32 %v41, %v109
  %v155 = vadd.f32 %v42, %v112
  %v156 = vadd.f32 %v43, %v115
  %v157 = vadd.f32 %v44, %v118
  %v158 = vadd.f32 %v45, %v121
  %v159 = vadd.f32 %v46, %v124
  %v160 = vadd.f32 %v47, %v127
  %v161 = vadd.f32 %v48, %v130
  %v162 = vadd.f32 %v49, %v133
  %v163 = vadd.f32 %v50, %v136
  %v164 = vadd.f32 %v51, %v139
  %v165 = vadd.f32 %v52, %v142
  %v166 = vadd.f32 %v53, %v145
  %v167 = vadd.f32 %v54, %v148
  %v168 = vadd.f32 %v55, %v151
  %169 = vst [vmem:[#allocation2] sm:$0xff] %v153
  %170 = vst [vmem:[#allocation2 + $0x8] sm:$0xff] %v154
  %171 = vst [vmem:[#allocation2 + $0x10] sm:$0xff] %v155
  %172 = vst [vmem:[#allocation2 + $0x18] sm:$0xff] %v156
  %173 = vst [vmem:[#allocation2 + $0x20] sm:$0xff] %v157
  %174 = vst [vmem:[#allocation2 + $0x28] sm:$0xff] %v158
  %175 = vst [vmem:[#allocation2 + $0x30] sm:$0xff] %v159
  %176 = vst [vmem:[#allocation2 + $0x38] sm:$0xff] %v160
  %177 = vst [vmem:[#allocation2 + $0x40] sm:$0xff] %v161
  %178 = vst [vmem:[#allocation2 + $0x48] sm:$0xff] %v162
  %179 = vst [vmem:[#allocation2 + $0x50] sm:$0xff] %v163
  %180 = vst [vmem:[#allocation2 + $0x58] sm:$0xff] %v164
  %181 = vst [vmem:[#allocation2 + $0x60] sm:$0xff] %v165
  %182 = vst [vmem:[#allocation2 + $0x68] sm:$0xff] %v166
  %183 = vst [vmem:[#allocation2 + $0x70] sm:$0xff] %v167
  %184 = vst [vmem:[#allocation2 + $0x78] sm:$0xff] %v168
  // Predicated region
  $region26: #{linear_block.1} parent=0 // pred_check
    %p185 = pneg %p20
  $region27: #{linear_block.1} parent=0 // pred_check_branch
    %187 = sbr.rel (%p185) target = $region29
  $region28: #{linear_block.1} parent=0 // pred_region
    %v188 = vld [vmem:[#allocation2] sm:$0xff]
    %v189 = vld [vmem:[#allocation2 + $0x8] sm:$0xff]
    %v190 = vld [vmem:[#allocation2 + $0x10] sm:$0xff]
    %v191 = vld [vmem:[#allocation2 + $0x18] sm:$0xff]
    %v192 = vld [vmem:[#allocation2 + $0x20] sm:$0xff]
    %v193 = vld [vmem:[#allocation2 + $0x28] sm:$0xff]
    %v194 = vld [vmem:[#allocation2 + $0x30] sm:$0xff]
    %v195 = vld [vmem:[#allocation2 + $0x38] sm:$0xff]
    %v196 = vld [vmem:[#allocation2 + $0x40] sm:$0xff]
    %v197 = vld [vmem:[#allocation2 + $0x48] sm:$0xff]
    %v198 = vld [vmem:[#allocation2 + $0x50] sm:$0xff]
    %v199 = vld [vmem:[#allocation2 + $0x58] sm:$0xff]
    %v200 = vld [vmem:[#allocation2 + $0x60] sm:$0xff]
    %v201 = vld [vmem:[#allocation2 + $0x68] sm:$0xff]
    %v202 = vld [vmem:[#allocation2 + $0x70] sm:$0xff]
    %v203 = vld [vmem:[#allocation2 + $0x78] sm:$0xff]
    %v204 = vld [vmem:[%s2] sm:$0x1]
    %v206 = vperm.slane %v204, 0
    %v208 = vadd.f32 %v188, %v206
    %v209 = vadd.f32 %v189, %v206
    %v210 = vadd.f32 %v190, %v206
    %v211 = vadd.f32 %v191, %v206
    %v212 = vadd.f32 %v192, %v206
    %v213 = vadd.f32 %v193, %v206
    %v214 = vadd.f32 %v194, %v206
    %v215 = vadd.f32 %v195, %v206
    %v216 = vadd.f32 %v196, %v206
    %v217 = vadd.f32 %v197, %v206
    %v218 = vadd.f32 %v198, %v206
    %v219 = vadd.f32 %v199, %v206
    %v220 = vadd.f32 %v200, %v206
    %v221 = vadd.f32 %v201, %v206
    %v222 = vadd.f32 %v202, %v206
    %v223 = vadd.f32 %v203, %v206
    %v224 = vmul.f32 %v208, 0.5
    %v225 = vmul.f32 %v209, 0.5
    %v226 = vmul.f32 %v210, 0.5
    %v227 = vmul.f32 %v211, 0.5
    %v228 = vmul.f32 %v212, 0.5
    %v229 = vmul.f32 %v213, 0.5
    %v230 = vmul.f32 %v214, 0.5
    %v231 = vmul.f32 %v215, 0.5
    %v232 = vmul.f32 %v216, 0.5
    %v233 = vmul.f32 %v217, 0.5
    %v234 = vmul.f32 %v218, 0.5
    %v235 = vmul.f32 %v219, 0.5
    %v236 = vmul.f32 %v220, 0.5
    %v237 = vmul.f32 %v221, 0.5
    %v238 = vmul.f32 %v222, 0.5
    %v239 = vmul.f32 %v223, 0.5
    %v240 = vmul.f32 %v208, 0.70710677
    %v241 = vmul.f32 %v209, 0.70710677
    %v242 = vmul.f32 %v210, 0.70710677
    %v243 = vmul.f32 %v211, 0.70710677
    %v244 = vmul.f32 %v212, 0.70710677
    %v245 = vmul.f32 %v213, 0.70710677
    %v246 = vmul.f32 %v214, 0.70710677
    %v247 = vmul.f32 %v215, 0.70710677
    %v248 = vmul.f32 %v216, 0.70710677
    %v249 = vmul.f32 %v217, 0.70710677
    %v250 = vmul.f32 %v218, 0.70710677
    %v251 = vmul.f32 %v219, 0.70710677
    %v252 = vmul.f32 %v220, 0.70710677
    %v253 = vmul.f32 %v221, 0.70710677
    %v254 = vmul.f32 %v222, 0.70710677
    %v255 = vmul.f32 %v223, 0.70710677
    %v256 = vmul.f32 %v240, %v240
    %v257 = vmin.f32 16.0, %v256
    %v258 = vmul.f32 %v257, 2.1237322e-06
    %v259 = vadd.f32 %v258, 0.00028619796
    %v260 = vmul.f32 %v257, %v259
    %v261 = vadd.f32 %v260, 0.0036580483
    %v262 = vmul.f32 %v257, %v261
    %v263 = vadd.f32 %v262, 0.05243302
    %v264 = vmul.f32 %v257, %v263
    %v265 = vadd.f32 %v264, 0.18741608
    %v266 = vmul.f32 %v257, %v265
    %v267 = vadd.f32 %v266, 1.1283791
    %v268 = vmul.f32 %v240, %v267
    %v269 = vmul.f32 %v257, 3.8918573e-05
    %v270 = vadd.f32 %v269, 0.001143296
    %v271 = vmul.f32 %v257, %v270
    %v272 = vadd.f32 %v271, 0.014752088
    %v273 = vmul.f32 %v257, %v272
    %v274 = vadd.f32 %v273, 0.112945676
    %v275 = vmul.f32 %v257, %v274
    %v276 = vadd.f32 %v275, 0.4994258
    %v277 = vmul.f32 %v257, %v276
    %v278 = vadd.f32 %v277, 1.0
    %v279 = vrcp.pop %v278
    %v280 = vmul.f32 %v278, %v279
    %v281 = vsub.f32 1.0, %v280
    %v282 = vmul.f32 %v279, %v281
    %v283 = vadd.f32 %v279, %v282
    %vm284 = vweird.f32 %v278
    %vm285 = vweird.f32 %v279
    %vm286 = vmor %vm284, %vm285
    %v287 = vsel %vm286, %v279, %v283
    %v288 = vand.u32 2147483647, %v278
    %vm289 = vcmp.eq.f32.partialorder %v288, 8.507059e+37
    %v290 = vand.u32 %v278, 2147483648
    %v291 = vor.u32 1.1754944e-38, %v290
    %v292 = vsel %vm289, %v291, %v287
    %v293 = vmul.f32 %v268, %v292
    %v294 = vmin.f32 %v293, 1.0
    %v295 = vmax.f32 %v294, -1.0
    %v296 = vmul.f32 %v241, %v241
    %v297 = vmin.f32 16.0, %v296
    %v298 = vmul.f32 %v297, 2.1237322e-06
    %v299 = vadd.f32 %v298, 0.00028619796
    %v300 = vmul.f32 %v297, %v299
    %v301 = vadd.f32 %v300, 0.0036580483
    %v302 = vmul.f32 %v297, %v301
    %v303 = vadd.f32 %v302, 0.05243302
    %v304 = vmul.f32 %v297, %v303
    %v305 = vadd.f32 %v304, 0.18741608
    %v306 = vmul.f32 %v297, %v305
    %v307 = vadd.f32 %v306, 1.1283791
    %v308 = vmul.f32 %v241, %v307
    %v309 = vmul.f32 %v297, 3.8918573e-05
    %v310 = vadd.f32 %v309, 0.001143296
    %v311 = vmul.f32 %v297, %v310
    %v312 = vadd.f32 %v311, 0.014752088
    %v313 = vmul.f32 %v297, %v312
    %v314 = vadd.f32 %v313, 0.112945676
    %v315 = vmul.f32 %v297, %v314
    %v316 = vadd.f32 %v315, 0.4994258
    %v317 = vmul.f32 %v297, %v316
    %v318 = vadd.f32 %v317, 1.0
    %v319 = vrcp.pop %v318
    %v320 = vmul.f32 %v318, %v319
    %v321 = vsub.f32 1.0, %v320
    %v322 = vmul.f32 %v319, %v321
    %v323 = vadd.f32 %v319, %v322
    %vm324 = vweird.f32 %v318
    %vm325 = vweird.f32 %v319
    %vm326 = vmor %vm324, %vm325
    %v327 = vsel %vm326, %v319, %v323
    %v328 = vand.u32 2147483647, %v318
    %vm329 = vcmp.eq.f32.partialorder %v328, 8.507059e+37
    %v330 = vand.u32 %v318, 2147483648
    %v331 = vor.u32 1.1754944e-38, %v330
    %v332 = vsel %vm329, %v331, %v327
    %v333 = vmul.f32 %v308, %v332
    %v334 = vmin.f32 %v333, 1.0
    %v335 = vmax.f32 %v334, -1.0
    %v336 = vmul.f32 %v242, %v242
    %v337 = vmin.f32 16.0, %v336
    %v338 = vmul.f32 %v337, 2.1237322e-06
    %v339 = vadd.f32 %v338, 0.00028619796
    %v340 = vmul.f32 %v337, %v339
    %v341 = vadd.f32 %v340, 0.0036580483
    %v342 = vmul.f32 %v337, %v341
    %v343 = vadd.f32 %v342, 0.05243302
    %v344 = vmul.f32 %v337, %v343
    %v345 = vadd.f32 %v344, 0.18741608
    %v346 = vmul.f32 %v337, %v345
    %v347 = vadd.f32 %v346, 1.1283791
    %v348 = vmul.f32 %v242, %v347
    %v349 = vmul.f32 %v337, 3.8918573e-05
    %v350 = vadd.f32 %v349, 0.001143296
    %v351 = vmul.f32 %v337, %v350
    %v352 = vadd.f32 %v351, 0.014752088
    %v353 = vmul.f32 %v337, %v352
    %v354 = vadd.f32 %v353, 0.112945676
    %v355 = vmul.f32 %v337, %v354
    %v356 = vadd.f32 %v355, 0.4994258
    %v357 = vmul.f32 %v337, %v356
    %v358 = vadd.f32 %v357, 1.0
    %v359 = vrcp.pop %v358
    %v360 = vmul.f32 %v358, %v359
    %v361 = vsub.f32 1.0, %v360
    %v362 = vmul.f32 %v359, %v361
    %v363 = vadd.f32 %v359, %v362
    %vm364 = vweird.f32 %v358
    %vm365 = vweird.f32 %v359
    %vm366 = vmor %vm364, %vm365
    %v367 = vsel %vm366, %v359, %v363
    %v368 = vand.u32 2147483647, %v358
    %vm369 = vcmp.eq.f32.partialorder %v368, 8.507059e+37
    %v370 = vand.u32 %v358, 2147483648
    %v371 = vor.u32 1.1754944e-38, %v370
    %v372 = vsel %vm369, %v371, %v367
    %v373 = vmul.f32 %v348, %v372
    %v374 = vmin.f32 %v373, 1.0
    %v375 = vmax.f32 %v374, -1.0
    %v376 = vmul.f32 %v243, %v243
    %v377 = vmin.f32 16.0, %v376
    %v378 = vmul.f32 %v377, 2.1237322e-06
    %v379 = vadd.f32 %v378, 0.00028619796
    %v380 = vmul.f32 %v377, %v379
    %v381 = vadd.f32 %v380, 0.0036580483
    %v382 = vmul.f32 %v377, %v381
    %v383 = vadd.f32 %v382, 0.05243302
    %v384 = vmul.f32 %v377, %v383
    %v385 = vadd.f32 %v384, 0.18741608
    %v386 = vmul.f32 %v377, %v385
    %v387 = vadd.f32 %v386, 1.1283791
    %v388 = vmul.f32 %v243, %v387
    %v389 = vmul.f32 %v377, 3.8918573e-05
    %v390 = vadd.f32 %v389, 0.001143296
    %v391 = vmul.f32 %v377, %v390
    %v392 = vadd.f32 %v391, 0.014752088
    %v393 = vmul.f32 %v377, %v392
    %v394 = vadd.f32 %v393, 0.112945676
    %v395 = vmul.f32 %v377, %v394
    %v396 = vadd.f32 %v395, 0.4994258
    %v397 = vmul.f32 %v377, %v396
    %v398 = vadd.f32 %v397, 1.0
    %v399 = vrcp.pop %v398
    %v400 = vmul.f32 %v398, %v399
    %v401 = vsub.f32 1.0, %v400
    %v402 = vmul.f32 %v399, %v401
    %v403 = vadd.f32 %v399, %v402
    %vm404 = vweird.f32 %v398
    %vm405 = vweird.f32 %v399
    %vm406 = vmor %vm404, %vm405
    %v407 = vsel %vm406, %v399, %v403
    %v408 = vand.u32 2147483647, %v398
    %vm409 = vcmp.eq.f32.partialorder %v408, 8.507059e+37
    %v410 = vand.u32 %v398, 2147483648
    %v411 = vor.u32 1.1754944e-38, %v410
    %v412 = vsel %vm409, %v411, %v407
    %v413 = vmul.f32 %v388, %v412
    %v414 = vmin.f32 %v413, 1.0
    %v415 = vmax.f32 %v414, -1.0
    %v416 = vmul.f32 %v244, %v244
    %v417 = vmin.f32 16.0, %v416
    %v418 = vmul.f32 %v417, 2.1237322e-06
    %v419 = vadd.f32 %v418, 0.00028619796
    %v420 = vmul.f32 %v417, %v419
    %v421 = vadd.f32 %v420, 0.0036580483
    %v422 = vmul.f32 %v417, %v421
    %v423 = vadd.f32 %v422, 0.05243302
    %v424 = vmul.f32 %v417, %v423
    %v425 = vadd.f32 %v424, 0.18741608
    %v426 = vmul.f32 %v417, %v425
    %v427 = vadd.f32 %v426, 1.1283791
    %v428 = vmul.f32 %v244, %v427
    %v429 = vmul.f32 %v417, 3.8918573e-05
    %v430 = vadd.f32 %v429, 0.001143296
    %v431 = vmul.f32 %v417, %v430
    %v432 = vadd.f32 %v431, 0.014752088
    %v433 = vmul.f32 %v417, %v432
    %v434 = vadd.f32 %v433, 0.112945676
    %v435 = vmul.f32 %v417, %v434
    %v436 = vadd.f32 %v435, 0.4994258
    %v437 = vmul.f32 %v417, %v436
    %v438 = vadd.f32 %v437, 1.0
    %v439 = vrcp.pop %v438
    %v440 = vmul.f32 %v438, %v439
    %v441 = vsub.f32 1.0, %v440
    %v442 = vmul.f32 %v439, %v441
    %v443 = vadd.f32 %v439, %v442
    %vm444 = vweird.f32 %v438
    %vm445 = vweird.f32 %v439
    %vm446 = vmor %vm444, %vm445
    %v447 = vsel %vm446, %v439, %v443
    %v448 = vand.u32 2147483647, %v438
    %vm449 = vcmp.eq.f32.partialorder %v448, 8.507059e+37
    %v450 = vand.u32 %v438, 2147483648
    %v451 = vor.u32 1.1754944e-38, %v450
    %v452 = vsel %vm449, %v451, %v447
    %v453 = vmul.f32 %v428, %v452
    %v454 = vmin.f32 %v453, 1.0
    %v455 = vmax.f32 %v454, -1.0
    %v456 = vmul.f32 %v245, %v245
    %v457 = vmin.f32 16.0, %v456
    %v458 = vmul.f32 %v457, 2.1237322e-06
    %v459 = vadd.f32 %v458, 0.00028619796
    %v460 = vmul.f32 %v457, %v459
    %v461 = vadd.f32 %v460, 0.0036580483
    %v462 = vmul.f32 %v457, %v461
    %v463 = vadd.f32 %v462, 0.05243302
    %v464 = vmul.f32 %v457, %v463
    %v465 = vadd.f32 %v464, 0.18741608
    %v466 = vmul.f32 %v457, %v465
    %v467 = vadd.f32 %v466, 1.1283791
    %v468 = vmul.f32 %v245, %v467
    %v469 = vmul.f32 %v457, 3.8918573e-05
    %v470 = vadd.f32 %v469, 0.001143296
    %v471 = vmul.f32 %v457, %v470
    %v472 = vadd.f32 %v471, 0.014752088
    %v473 = vmul.f32 %v457, %v472
    %v474 = vadd.f32 %v473, 0.112945676
    %v475 = vmul.f32 %v457, %v474
    %v476 = vadd.f32 %v475, 0.4994258
    %v477 = vmul.f32 %v457, %v476
    %v478 = vadd.f32 %v477, 1.0
    %v479 = vrcp.pop %v478
    %v480 = vmul.f32 %v478, %v479
    %v481 = vsub.f32 1.0, %v480
    %v482 = vmul.f32 %v479, %v481
    %v483 = vadd.f32 %v479, %v482
    %vm484 = vweird.f32 %v478
    %vm485 = vweird.f32 %v479
    %vm486 = vmor %vm484, %vm485
    %v487 = vsel %vm486, %v479, %v483
    %v488 = vand.u32 2147483647, %v478
    %vm489 = vcmp.eq.f32.partialorder %v488, 8.507059e+37
    %v490 = vand.u32 %v478, 2147483648
    %v491 = vor.u32 1.1754944e-38, %v490
    %v492 = vsel %vm489, %v491, %v487
    %v493 = vmul.f32 %v468, %v492
    %v494 = vmin.f32 %v493, 1.0
    %v495 = vmax.f32 %v494, -1.0
    %v496 = vmul.f32 %v246, %v246
    %v497 = vmin.f32 16.0, %v496
    %v498 = vmul.f32 %v497, 2.1237322e-06
    %v499 = vadd.f32 %v498, 0.00028619796
    %v500 = vmul.f32 %v497, %v499
    %v501 = vadd.f32 %v500, 0.0036580483
    %v502 = vmul.f32 %v497, %v501
    %v503 = vadd.f32 %v502, 0.05243302
    %v504 = vmul.f32 %v497, %v503
    %v505 = vadd.f32 %v504, 0.18741608
    %v506 = vmul.f32 %v497, %v505
    %v507 = vadd.f32 %v506, 1.1283791
    %v508 = vmul.f32 %v246, %v507
    %v509 = vmul.f32 %v497, 3.8918573e-05
    %v510 = vadd.f32 %v509, 0.001143296
    %v511 = vmul.f32 %v497, %v510
    %v512 = vadd.f32 %v511, 0.014752088
    %v513 = vmul.f32 %v497, %v512
    %v514 = vadd.f32 %v513, 0.112945676
    %v515 = vmul.f32 %v497, %v514
    %v516 = vadd.f32 %v515, 0.4994258
    %v517 = vmul.f32 %v497, %v516
    %v518 = vadd.f32 %v517, 1.0
    %v519 = vrcp.pop %v518
    %v520 = vmul.f32 %v518, %v519
    %v521 = vsub.f32 1.0, %v520
    %v522 = vmul.f32 %v519, %v521
    %v523 = vadd.f32 %v519, %v522
    %vm524 = vweird.f32 %v518
    %vm525 = vweird.f32 %v519
    %vm526 = vmor %vm524, %vm525
    %v527 = vsel %vm526, %v519, %v523
    %v528 = vand.u32 2147483647, %v518
    %vm529 = vcmp.eq.f32.partialorder %v528, 8.507059e+37
    %v530 = vand.u32 %v518, 2147483648
    %v531 = vor.u32 1.1754944e-38, %v530
    %v532 = vsel %vm529, %v531, %v527
    %v533 = vmul.f32 %v508, %v532
    %v534 = vmin.f32 %v533, 1.0
    %v535 = vmax.f32 %v534, -1.0
    %v536 = vmul.f32 %v247, %v247
    %v537 = vmin.f32 16.0, %v536
    %v538 = vmul.f32 %v537, 2.1237322e-06
    %v539 = vadd.f32 %v538, 0.00028619796
    %v540 = vmul.f32 %v537, %v539
    %v541 = vadd.f32 %v540, 0.0036580483
    %v542 = vmul.f32 %v537, %v541
    %v543 = vadd.f32 %v542, 0.05243302
    %v544 = vmul.f32 %v537, %v543
    %v545 = vadd.f32 %v544, 0.18741608
    %v546 = vmul.f32 %v537, %v545
    %v547 = vadd.f32 %v546, 1.1283791
    %v548 = vmul.f32 %v247, %v547
    %v549 = vmul.f32 %v537, 3.8918573e-05
    %v550 = vadd.f32 %v549, 0.001143296
    %v551 = vmul.f32 %v537, %v550
    %v552 = vadd.f32 %v551, 0.014752088
    %v553 = vmul.f32 %v537, %v552
    %v554 = vadd.f32 %v553, 0.112945676
    %v555 = vmul.f32 %v537, %v554
    %v556 = vadd.f32 %v555, 0.4994258
    %v557 = vmul.f32 %v537, %v556
    %v558 = vadd.f32 %v557, 1.0
    %v559 = vrcp.pop %v558
    %v560 = vmul.f32 %v558, %v559
    %v561 = vsub.f32 1.0, %v560
    %v562 = vmul.f32 %v559, %v561
    %v563 = vadd.f32 %v559, %v562
    %vm564 = vweird.f32 %v558
    %vm565 = vweird.f32 %v559
    %vm566 = vmor %vm564, %vm565
    %v567 = vsel %vm566, %v559, %v563
    %v568 = vand.u32 2147483647, %v558
    %vm569 = vcmp.eq.f32.partialorder %v568, 8.507059e+37
    %v570 = vand.u32 %v558, 2147483648
    %v571 = vor.u32 1.1754944e-38, %v570
    %v572 = vsel %vm569, %v571, %v567
    %v573 = vmul.f32 %v548, %v572
    %v574 = vmin.f32 %v573, 1.0
    %v575 = vmax.f32 %v574, -1.0
    %v576 = vmul.f32 %v248, %v248
    %v577 = vmin.f32 16.0, %v576
    %v578 = vmul.f32 %v577, 2.1237322e-06
    %v579 = vadd.f32 %v578, 0.00028619796
    %v580 = vmul.f32 %v577, %v579
    %v581 = vadd.f32 %v580, 0.0036580483
    %v582 = vmul.f32 %v577, %v581
    %v583 = vadd.f32 %v582, 0.05243302
    %v584 = vmul.f32 %v577, %v583
    %v585 = vadd.f32 %v584, 0.18741608
    %v586 = vmul.f32 %v577, %v585
    %v587 = vadd.f32 %v586, 1.1283791
    %v588 = vmul.f32 %v248, %v587
    %v589 = vmul.f32 %v577, 3.8918573e-05
    %v590 = vadd.f32 %v589, 0.001143296
    %v591 = vmul.f32 %v577, %v590
    %v592 = vadd.f32 %v591, 0.014752088
    %v593 = vmul.f32 %v577, %v592
    %v594 = vadd.f32 %v593, 0.112945676
    %v595 = vmul.f32 %v577, %v594
    %v596 = vadd.f32 %v595, 0.4994258
    %v597 = vmul.f32 %v577, %v596
    %v598 = vadd.f32 %v597, 1.0
    %v599 = vrcp.pop %v598
    %v600 = vmul.f32 %v598, %v599
    %v601 = vsub.f32 1.0, %v600
    %v602 = vmul.f32 %v599, %v601
    %v603 = vadd.f32 %v599, %v602
    %vm604 = vweird.f32 %v598
    %vm605 = vweird.f32 %v599
    %vm606 = vmor %vm604, %vm605
    %v607 = vsel %vm606, %v599, %v603
    %v608 = vand.u32 2147483647, %v598
    %vm609 = vcmp.eq.f32.partialorder %v608, 8.507059e+37
    %v610 = vand.u32 %v598, 2147483648
    %v611 = vor.u32 1.1754944e-38, %v610
    %v612 = vsel %vm609, %v611, %v607
    %v613 = vmul.f32 %v588, %v612
    %v614 = vmin.f32 %v613, 1.0
    %v615 = vmax.f32 %v614, -1.0
    %v616 = vmul.f32 %v249, %v249
    %v617 = vmin.f32 16.0, %v616
    %v618 = vmul.f32 %v617, 2.1237322e-06
    %v619 = vadd.f32 %v618, 0.00028619796
    %v620 = vmul.f32 %v617, %v619
    %v621 = vadd.f32 %v620, 0.0036580483
    %v622 = vmul.f32 %v617, %v621
    %v623 = vadd.f32 %v622, 0.05243302
    %v624 = vmul.f32 %v617, %v623
    %v625 = vadd.f32 %v624, 0.18741608
    %v626 = vmul.f32 %v617, %v625
    %v627 = vadd.f32 %v626, 1.1283791
    %v628 = vmul.f32 %v249, %v627
    %v629 = vmul.f32 %v617, 3.8918573e-05
    %v630 = vadd.f32 %v629, 0.001143296
    %v631 = vmul.f32 %v617, %v630
    %v632 = vadd.f32 %v631, 0.014752088
    %v633 = vmul.f32 %v617, %v632
    %v634 = vadd.f32 %v633, 0.112945676
    %v635 = vmul.f32 %v617, %v634
    %v636 = vadd.f32 %v635, 0.4994258
    %v637 = vmul.f32 %v617, %v636
    %v638 = vadd.f32 %v637, 1.0
    %v639 = vrcp.pop %v638
    %v640 = vmul.f32 %v638, %v639
    %v641 = vsub.f32 1.0, %v640
    %v642 = vmul.f32 %v639, %v641
    %v643 = vadd.f32 %v639, %v642
    %vm644 = vweird.f32 %v638
    %vm645 = vweird.f32 %v639
    %vm646 = vmor %vm644, %vm645
    %v647 = vsel %vm646, %v639, %v643
    %v648 = vand.u32 2147483647, %v638
    %vm649 = vcmp.eq.f32.partialorder %v648, 8.507059e+37
    %v650 = vand.u32 %v638, 2147483648
    %v651 = vor.u32 1.1754944e-38, %v650
    %v652 = vsel %vm649, %v651, %v647
    %v653 = vmul.f32 %v628, %v652
    %v654 = vmin.f32 %v653, 1.0
    %v655 = vmax.f32 %v654, -1.0
    %v656 = vmul.f32 %v250, %v250
    %v657 = vmin.f32 16.0, %v656
    %v658 = vmul.f32 %v657, 2.1237322e-06
    %v659 = vadd.f32 %v658, 0.00028619796
    %v660 = vmul.f32 %v657, %v659
    %v661 = vadd.f32 %v660, 0.0036580483
    %v662 = vmul.f32 %v657, %v661
    %v663 = vadd.f32 %v662, 0.05243302
    %v664 = vmul.f32 %v657, %v663
    %v665 = vadd.f32 %v664, 0.18741608
    %v666 = vmul.f32 %v657, %v665
    %v667 = vadd.f32 %v666, 1.1283791
    %v668 = vmul.f32 %v250, %v667
    %v669 = vmul.f32 %v657, 3.8918573e-05
    %v670 = vadd.f32 %v669, 0.001143296
    %v671 = vmul.f32 %v657, %v670
    %v672 = vadd.f32 %v671, 0.014752088
    %v673 = vmul.f32 %v657, %v672
    %v674 = vadd.f32 %v673, 0.112945676
    %v675 = vmul.f32 %v657, %v674
    %v676 = vadd.f32 %v675, 0.4994258
    %v677 = vmul.f32 %v657, %v676
    %v678 = vadd.f32 %v677, 1.0
    %v679 = vrcp.pop %v678
    %v680 = vmul.f32 %v678, %v679
    %v681 = vsub.f32 1.0, %v680
    %v682 = vmul.f32 %v679, %v681
    %v683 = vadd.f32 %v679, %v682
    %vm684 = vweird.f32 %v678
    %vm685 = vweird.f32 %v679
    %vm686 = vmor %vm684, %vm685
    %v687 = vsel %vm686, %v679, %v683
    %v688 = vand.u32 2147483647, %v678
    %vm689 = vcmp.eq.f32.partialorder %v688, 8.507059e+37
    %v690 = vand.u32 %v678, 2147483648
    %v691 = vor.u32 1.1754944e-38, %v690
    %v692 = vsel %vm689, %v691, %v687
    %v693 = vmul.f32 %v668, %v692
    %v694 = vmin.f32 %v693, 1.0
    %v695 = vmax.f32 %v694, -1.0
    %v696 = vmul.f32 %v251, %v251
    %v697 = vmin.f32 16.0, %v696
    %v698 = vmul.f32 %v697, 2.1237322e-06
    %v699 = vadd.f32 %v698, 0.00028619796
    %v700 = vmul.f32 %v697, %v699
    %v701 = vadd.f32 %v700, 0.0036580483
    %v702 = vmul.f32 %v697, %v701
    %v703 = vadd.f32 %v702, 0.05243302
    %v704 = vmul.f32 %v697, %v703
    %v705 = vadd.f32 %v704, 0.18741608
    %v706 = vmul.f32 %v697, %v705
    %v707 = vadd.f32 %v706, 1.1283791
    %v708 = vmul.f32 %v251, %v707
    %v709 = vmul.f32 %v697, 3.8918573e-05
    %v710 = vadd.f32 %v709, 0.001143296
    %v711 = vmul.f32 %v697, %v710
    %v712 = vadd.f32 %v711, 0.014752088
    %v713 = vmul.f32 %v697, %v712
    %v714 = vadd.f32 %v713, 0.112945676
    %v715 = vmul.f32 %v697, %v714
    %v716 = vadd.f32 %v715, 0.4994258
    %v717 = vmul.f32 %v697, %v716
    %v718 = vadd.f32 %v717, 1.0
    %v719 = vrcp.pop %v718
    %v720 = vmul.f32 %v718, %v719
    %v721 = vsub.f32 1.0, %v720
    %v722 = vmul.f32 %v719, %v721
    %v723 = vadd.f32 %v719, %v722
    %vm724 = vweird.f32 %v718
    %vm725 = vweird.f32 %v719
    %vm726 = vmor %vm724, %vm725
    %v727 = vsel %vm726, %v719, %v723
    %v728 = vand.u32 2147483647, %v718
    %vm729 = vcmp.eq.f32.partialorder %v728, 8.507059e+37
    %v730 = vand.u32 %v718, 2147483648
    %v731 = vor.u32 1.1754944e-38, %v730
    %v732 = vsel %vm729, %v731, %v727
    %v733 = vmul.f32 %v708, %v732
    %v734 = vmin.f32 %v733, 1.0
    %v735 = vmax.f32 %v734, -1.0
    %v736 = vmul.f32 %v252, %v252
    %v737 = vmin.f32 16.0, %v736
    %v738 = vmul.f32 %v737, 2.1237322e-06
    %v739 = vadd.f32 %v738, 0.00028619796
    %v740 = vmul.f32 %v737, %v739
    %v741 = vadd.f32 %v740, 0.0036580483
    %v742 = vmul.f32 %v737, %v741
    %v743 = vadd.f32 %v742, 0.05243302
    %v744 = vmul.f32 %v737, %v743
    %v745 = vadd.f32 %v744, 0.18741608
    %v746 = vmul.f32 %v737, %v745
    %v747 = vadd.f32 %v746, 1.1283791
    %v748 = vmul.f32 %v252, %v747
    %v749 = vmul.f32 %v737, 3.8918573e-05
    %v750 = vadd.f32 %v749, 0.001143296
    %v751 = vmul.f32 %v737, %v750
    %v752 = vadd.f32 %v751, 0.014752088
    %v753 = vmul.f32 %v737, %v752
    %v754 = vadd.f32 %v753, 0.112945676
    %v755 = vmul.f32 %v737, %v754
    %v756 = vadd.f32 %v755, 0.4994258
    %v757 = vmul.f32 %v737, %v756
    %v758 = vadd.f32 %v757, 1.0
    %v759 = vrcp.pop %v758
    %v760 = vmul.f32 %v758, %v759
    %v761 = vsub.f32 1.0, %v760
    %v762 = vmul.f32 %v759, %v761
    %v763 = vadd.f32 %v759, %v762
    %vm764 = vweird.f32 %v758
    %vm765 = vweird.f32 %v759
    %vm766 = vmor %vm764, %vm765
    %v767 = vsel %vm766, %v759, %v763
    %v768 = vand.u32 2147483647, %v758
    %vm769 = vcmp.eq.f32.partialorder %v768, 8.507059e+37
    %v770 = vand.u32 %v758, 2147483648
    %v771 = vor.u32 1.1754944e-38, %v770
    %v772 = vsel %vm769, %v771, %v767
    %v773 = vmul.f32 %v748, %v772
    %v774 = vmin.f32 %v773, 1.0
    %v775 = vmax.f32 %v774, -1.0
    %v776 = vmul.f32 %v253, %v253
    %v777 = vmin.f32 16.0, %v776
    %v778 = vmul.f32 %v777, 2.1237322e-06
    %v779 = vadd.f32 %v778, 0.00028619796
    %v780 = vmul.f32 %v777, %v779
    %v781 = vadd.f32 %v780, 0.0036580483
    %v782 = vmul.f32 %v777, %v781
    %v783 = vadd.f32 %v782, 0.05243302
    %v784 = vmul.f32 %v777, %v783
    %v785 = vadd.f32 %v784, 0.18741608
    %v786 = vmul.f32 %v777, %v785
    %v787 = vadd.f32 %v786, 1.1283791
    %v788 = vmul.f32 %v253, %v787
    %v789 = vmul.f32 %v777, 3.8918573e-05
    %v790 = vadd.f32 %v789, 0.001143296
    %v791 = vmul.f32 %v777, %v790
    %v792 = vadd.f32 %v791, 0.014752088
    %v793 = vmul.f32 %v777, %v792
    %v794 = vadd.f32 %v793, 0.112945676
    %v795 = vmul.f32 %v777, %v794
    %v796 = vadd.f32 %v795, 0.4994258
    %v797 = vmul.f32 %v777, %v796
    %v798 = vadd.f32 %v797, 1.0
    %v799 = vrcp.pop %v798
    %v800 = vmul.f32 %v798, %v799
    %v801 = vsub.f32 1.0, %v800
    %v802 = vmul.f32 %v799, %v801
    %v803 = vadd.f32 %v799, %v802
    %vm804 = vweird.f32 %v798
    %vm805 = vweird.f32 %v799
    %vm806 = vmor %vm804, %vm805
    %v807 = vsel %vm806, %v799, %v803
    %v808 = vand.u32 2147483647, %v798
    %vm809 = vcmp.eq.f32.partialorder %v808, 8.507059e+37
    %v810 = vand.u32 %v798, 2147483648
    %v811 = vor.u32 1.1754944e-38, %v810
    %v812 = vsel %vm809, %v811, %v807
    %v813 = vmul.f32 %v788, %v812
    %v814 = vmin.f32 %v813, 1.0
    %v815 = vmax.f32 %v814, -1.0
    %v816 = vmul.f32 %v254, %v254
    %v817 = vmin.f32 16.0, %v816
    %v818 = vmul.f32 %v817, 2.1237322e-06
    %v819 = vadd.f32 %v818, 0.00028619796
    %v820 = vmul.f32 %v817, %v819
    %v821 = vadd.f32 %v820, 0.0036580483
    %v822 = vmul.f32 %v817, %v821
    %v823 = vadd.f32 %v822, 0.05243302
    %v824 = vmul.f32 %v817, %v823
    %v825 = vadd.f32 %v824, 0.18741608
    %v826 = vmul.f32 %v817, %v825
    %v827 = vadd.f32 %v826, 1.1283791
    %v828 = vmul.f32 %v254, %v827
    %v829 = vmul.f32 %v817, 3.8918573e-05
    %v830 = vadd.f32 %v829, 0.001143296
    %v831 = vmul.f32 %v817, %v830
    %v832 = vadd.f32 %v831, 0.014752088
    %v833 = vmul.f32 %v817, %v832
    %v834 = vadd.f32 %v833, 0.112945676
    %v835 = vmul.f32 %v817, %v834
    %v836 = vadd.f32 %v835, 0.4994258
    %v837 = vmul.f32 %v817, %v836
    %v838 = vadd.f32 %v837, 1.0
    %v839 = vrcp.pop %v838
    %v840 = vmul.f32 %v838, %v839
    %v841 = vsub.f32 1.0, %v840
    %v842 = vmul.f32 %v839, %v841
    %v843 = vadd.f32 %v839, %v842
    %vm844 = vweird.f32 %v838
    %vm845 = vweird.f32 %v839
    %vm846 = vmor %vm844, %vm845
    %v847 = vsel %vm846, %v839, %v843
    %v848 = vand.u32 2147483647, %v838
    %vm849 = vcmp.eq.f32.partialorder %v848, 8.507059e+37
    %v850 = vand.u32 %v838, 2147483648
    %v851 = vor.u32 1.1754944e-38, %v850
    %v852 = vsel %vm849, %v851, %v847
    %v853 = vmul.f32 %v828, %v852
    %v854 = vmin.f32 %v853, 1.0
    %v855 = vmax.f32 %v854, -1.0
    %v856 = vmul.f32 %v255, %v255
    %v857 = vmin.f32 16.0, %v856
    %v858 = vmul.f32 %v857, 2.1237322e-06
    %v859 = vadd.f32 %v858, 0.00028619796
    %v860 = vmul.f32 %v857, %v859
    %v861 = vadd.f32 %v860, 0.0036580483
    %v862 = vmul.f32 %v857, %v861
    %v863 = vadd.f32 %v862, 0.05243302
    %v864 = vmul.f32 %v857, %v863
    %v865 = vadd.f32 %v864, 0.18741608
    %v866 = vmul.f32 %v857, %v865
    %v867 = vadd.f32 %v866, 1.1283791
    %v868 = vmul.f32 %v255, %v867
    %v869 = vmul.f32 %v857, 3.8918573e-05
    %v870 = vadd.f32 %v869, 0.001143296
    %v871 = vmul.f32 %v857, %v870
    %v872 = vadd.f32 %v871, 0.014752088
    %v873 = vmul.f32 %v857, %v872
    %v874 = vadd.f32 %v873, 0.112945676
    %v875 = vmul.f32 %v857, %v874
    %v876 = vadd.f32 %v875, 0.4994258
    %v877 = vmul.f32 %v857, %v876
    %v878 = vadd.f32 %v877, 1.0
    %v879 = vrcp.pop %v878
    %v880 = vmul.f32 %v878, %v879
    %v881 = vsub.f32 1.0, %v880
    %v882 = vmul.f32 %v879, %v881
    %v883 = vadd.f32 %v879, %v882
    %vm884 = vweird.f32 %v878
    %vm885 = vweird.f32 %v879
    %vm886 = vmor %vm884, %vm885
    %v887 = vsel %vm886, %v879, %v883
    %v888 = vand.u32 2147483647, %v878
    %vm889 = vcmp.eq.f32.partialorder %v888, 8.507059e+37
    %v890 = vand.u32 %v878, 2147483648
    %v891 = vor.u32 1.1754944e-38, %v890
    %v892 = vsel %vm889, %v891, %v887
    %v893 = vmul.f32 %v868, %v892
    %v894 = vmin.f32 %v893, 1.0
    %v895 = vmax.f32 %v894, -1.0
    %v896 = vadd.f32 %v295, 1.0
    %v897 = vadd.f32 %v335, 1.0
    %v898 = vadd.f32 %v375, 1.0
    %v899 = vadd.f32 %v415, 1.0
    %v900 = vadd.f32 %v455, 1.0
    %v901 = vadd.f32 %v495, 1.0
    %v902 = vadd.f32 %v535, 1.0
    %v903 = vadd.f32 %v575, 1.0
    %v904 = vadd.f32 %v615, 1.0
    %v905 = vadd.f32 %v655, 1.0
    %v906 = vadd.f32 %v695, 1.0
    %v907 = vadd.f32 %v735, 1.0
    %v908 = vadd.f32 %v775, 1.0
    %v909 = vadd.f32 %v815, 1.0
    %v910 = vadd.f32 %v855, 1.0
    %v911 = vadd.f32 %v895, 1.0
    %v912 = vmul.f32 %v224, %v896
    %v913 = vmul.f32 %v225, %v897
    %v914 = vmul.f32 %v226, %v898
    %v915 = vmul.f32 %v227, %v899
    %v916 = vmul.f32 %v228, %v900
    %v917 = vmul.f32 %v229, %v901
    %v918 = vmul.f32 %v230, %v902
    %v919 = vmul.f32 %v231, %v903
    %v920 = vmul.f32 %v232, %v904
    %v921 = vmul.f32 %v233, %v905
    %v922 = vmul.f32 %v234, %v906
    %v923 = vmul.f32 %v235, %v907
    %v924 = vmul.f32 %v236, %v908
    %v925 = vmul.f32 %v237, %v909
    %v926 = vmul.f32 %v238, %v910
    %v927 = vmul.f32 %v239, %v911
    %v928 = vld [vmem:[%s3] sm:$0xff]
    %v929 = vld [vmem:[%s3 + $0x8] sm:$0xff]
    %v930 = vld [vmem:[%s3 + $0x10] sm:$0xff]
    %v931 = vld [vmem:[%s3 + $0x18] sm:$0xff]
    %v932 = vld [vmem:[%s3 + $0x20] sm:$0xff]
    %v933 = vld [vmem:[%s3 + $0x28] sm:$0xff]
    %v934 = vld [vmem:[%s3 + $0x30] sm:$0xff]
    %v935 = vld [vmem:[%s3 + $0x38] sm:$0xff]
    %v936 = vld [vmem:[%s3 + $0x40] sm:$0xff]
    %v937 = vld [vmem:[%s3 + $0x48] sm:$0xff]
    %v938 = vld [vmem:[%s3 + $0x50] sm:$0xff]
    %v939 = vld [vmem:[%s3 + $0x58] sm:$0xff]
    %v940 = vld [vmem:[%s3 + $0x60] sm:$0xff]
    %v941 = vld [vmem:[%s3 + $0x68] sm:$0xff]
    %v942 = vld [vmem:[%s3 + $0x70] sm:$0xff]
    %v943 = vld [vmem:[%s3 + $0x78] sm:$0xff]
    %v944 = vld [vmem:[%s4] sm:$0x1]
    %v946 = vperm.slane %v944, 0
    %948 = vmatpush.msra.mxu0 %v943
    %949 = vmatpush.msra.mxu0 %v942
    %950 = vmatpush.msra.mxu0 %v941
    %951 = vmatpush.msra.mxu0 %v940
    %952 = vmatpush.msra.mxu0 %v939
    %953 = vmatpush.msra.mxu0 %v938
    %954 = vmatpush.msra.mxu0 %v937
    %955 = vmatpush.msra.mxu0 %v936
    %956 = vmatpush.msra.mxu0 %v935
    %957 = vmatpush.msra.mxu0 %v934
    %958 = vmatpush.msra.mxu0 %v933
    %959 = vmatpush.msra.mxu0 %v932
    %960 = vmatpush.msra.mxu0 %v931
    %961 = vmatpush.msra.mxu0 %v930
    %962 = vmatpush.msra.mxu0 %v929
    %963 = vmatpush.msra.mxu0 %v928
    %964 = vmatmul.f32.gmra.mxu0 %v912
    %v965 = vpop.f32.mrf.mxu0
    %v966 = vadd.f32 %v946, %v965
    %967 = vmatmul.f32.gmra.mxu0 %v913
    %v968 = vpop.f32.mrf.mxu0
    %v969 = vadd.f32 %v946, %v968
    %970 = vmatmul.f32.gmra.mxu0 %v914
    %v971 = vpop.f32.mrf.mxu0
    %v972 = vadd.f32 %v946, %v971
    %973 = vmatmul.f32.gmra.mxu0 %v915
    %v974 = vpop.f32.mrf.mxu0
    %v975 = vadd.f32 %v946, %v974
    %976 = vmatmul.f32.gmra.mxu0 %v916
    %v977 = vpop.f32.mrf.mxu0
    %v978 = vadd.f32 %v946, %v977
    %979 = vmatmul.f32.gmra.mxu0 %v917
    %v980 = vpop.f32.mrf.mxu0
    %v981 = vadd.f32 %v946, %v980
    %982 = vmatmul.f32.gmra.mxu0 %v918
    %v983 = vpop.f32.mrf.mxu0
    %v984 = vadd.f32 %v946, %v983
    %985 = vmatmul.f32.gmra.mxu0 %v919
    %v986 = vpop.f32.mrf.mxu0
    %v987 = vadd.f32 %v946, %v986
    %988 = vmatmul.f32.gmra.mxu0 %v920
    %v989 = vpop.f32.mrf.mxu0
    %v990 = vadd.f32 %v946, %v989
    %991 = vmatmul.f32.gmra.mxu0 %v921
    %v992 = vpop.f32.mrf.mxu0
    %v993 = vadd.f32 %v946, %v992
    %994 = vmatmul.f32.gmra.mxu0 %v922
    %v995 = vpop.f32.mrf.mxu0
    %v996 = vadd.f32 %v946, %v995
    %997 = vmatmul.f32.gmra.mxu0 %v923
    %v998 = vpop.f32.mrf.mxu0
    %v999 = vadd.f32 %v946, %v998
    %1000 = vmatmul.f32.gmra.mxu0 %v924
    %v1001 = vpop.f32.mrf.mxu0
    %v1002 = vadd.f32 %v946, %v1001
    %1003 = vmatmul.f32.gmra.mxu0 %v925
    %v1004 = vpop.f32.mrf.mxu0
    %v1005 = vadd.f32 %v946, %v1004
    %1006 = vmatmul.f32.gmra.mxu0 %v926
    %v1007 = vpop.f32.mrf.mxu0
    %v1008 = vadd.f32 %v946, %v1007
    %1009 = vmatmul.f32.gmra.mxu0 %v927
    %v1010 = vpop.f32.mrf.mxu0
    %v1011 = vadd.f32 %v946, %v1010
    %1012 = vdwg.mxu0
    %v1013 = vmul.f32 %v966, 0.5
    %v1014 = vmul.f32 %v969, 0.5
    %v1015 = vmul.f32 %v972, 0.5
    %v1016 = vmul.f32 %v975, 0.5
    %v1017 = vmul.f32 %v978, 0.5
    %v1018 = vmul.f32 %v981, 0.5
    %v1019 = vmul.f32 %v984, 0.5
    %v1020 = vmul.f32 %v987, 0.5
    %v1021 = vmul.f32 %v990, 0.5
    %v1022 = vmul.f32 %v993, 0.5
    %v1023 = vmul.f32 %v996, 0.5
    %v1024 = vmul.f32 %v999, 0.5
    %v1025 = vmul.f32 %v1002, 0.5
    %v1026 = vmul.f32 %v1005, 0.5
    %v1027 = vmul.f32 %v1008, 0.5
    %v1028 = vmul.f32 %v1011, 0.5
    %v1029 = vmul.f32 %v966, 0.70710677
    %v1030 = vmul.f32 %v969, 0.70710677
    %v1031 = vmul.f32 %v972, 0.70710677
    %v1032 = vmul.f32 %v975, 0.70710677
    %v1033 = vmul.f32 %v978, 0.70710677
    %v1034 = vmul.f32 %v981, 0.70710677
    %v1035 = vmul.f32 %v984, 0.70710677
    %v1036 = vmul.f32 %v987, 0.70710677
    %v1037 = vmul.f32 %v990, 0.70710677
    %v1038 = vmul.f32 %v993, 0.70710677
    %v1039 = vmul.f32 %v996, 0.70710677
    %v1040 = vmul.f32 %v999, 0.70710677
    %v1041 = vmul.f32 %v1002, 0.70710677
    %v1042 = vmul.f32 %v1005, 0.70710677
    %v1043 = vmul.f32 %v1008, 0.70710677
    %v1044 = vmul.f32 %v1011, 0.70710677
    %v1045 = vmul.f32 %v1029, %v1029
    %v1046 = vmin.f32 16.0, %v1045
    %v1047 = vmul.f32 %v1046, 2.1237322e-06
    %v1048 = vadd.f32 %v1047, 0.00028619796
    %v1049 = vmul.f32 %v1046, %v1048
    %v1050 = vadd.f32 %v1049, 0.0036580483
    %v1051 = vmul.f32 %v1046, %v1050
    %v1052 = vadd.f32 %v1051, 0.05243302
    %v1053 = vmul.f32 %v1046, %v1052
    %v1054 = vadd.f32 %v1053, 0.18741608
    %v1055 = vmul.f32 %v1046, %v1054
    %v1056 = vadd.f32 %v1055, 1.1283791
    %v1057 = vmul.f32 %v1029, %v1056
    %v1058 = vmul.f32 %v1046, 3.8918573e-05
    %v1059 = vadd.f32 %v1058, 0.001143296
    %v1060 = vmul.f32 %v1046, %v1059
    %v1061 = vadd.f32 %v1060, 0.014752088
    %v1062 = vmul.f32 %v1046, %v1061
    %v1063 = vadd.f32 %v1062, 0.112945676
    %v1064 = vmul.f32 %v1046, %v1063
    %v1065 = vadd.f32 %v1064, 0.4994258
    %v1066 = vmul.f32 %v1046, %v1065
    %v1067 = vadd.f32 %v1066, 1.0
    %v1068 = vrcp.pop %v1067
    %v1069 = vmul.f32 %v1067, %v1068
    %v1070 = vsub.f32 1.0, %v1069
    %v1071 = vmul.f32 %v1068, %v1070
    %v1072 = vadd.f32 %v1068, %v1071
    %vm1073 = vweird.f32 %v1067
    %vm1074 = vweird.f32 %v1068
    %vm1075 = vmor %vm1073, %vm1074
    %v1076 = vsel %vm1075, %v1068, %v1072
    %v1077 = vand.u32 2147483647, %v1067
    %vm1078 = vcmp.eq.f32.partialorder %v1077, 8.507059e+37
    %v1079 = vand.u32 %v1067, 2147483648
    %v1080 = vor.u32 1.1754944e-38, %v1079
    %v1081 = vsel %vm1078, %v1080, %v1076
    %v1082 = vmul.f32 %v1057, %v1081
    %v1083 = vmin.f32 %v1082, 1.0
    %v1084 = vmax.f32 %v1083, -1.0
    %v1085 = vmul.f32 %v1030, %v1030
    %v1086 = vmin.f32 16.0, %v1085
    %v1087 = vmul.f32 %v1086, 2.1237322e-06
    %v1088 = vadd.f32 %v1087, 0.00028619796
    %v1089 = vmul.f32 %v1086, %v1088
    %v1090 = vadd.f32 %v1089, 0.0036580483
    %v1091 = vmul.f32 %v1086, %v1090
    %v1092 = vadd.f32 %v1091, 0.05243302
    %v1093 = vmul.f32 %v1086, %v1092
    %v1094 = vadd.f32 %v1093, 0.18741608
    %v1095 = vmul.f32 %v1086, %v1094
    %v1096 = vadd.f32 %v1095, 1.1283791
    %v1097 = vmul.f32 %v1030, %v1096
    %v1098 = vmul.f32 %v1086, 3.8918573e-05
    %v1099 = vadd.f32 %v1098, 0.001143296
    %v1100 = vmul.f32 %v1086, %v1099
    %v1101 = vadd.f32 %v1100, 0.014752088
    %v1102 = vmul.f32 %v1086, %v1101
    %v1103 = vadd.f32 %v1102, 0.112945676
    %v1104 = vmul.f32 %v1086, %v1103
    %v1105 = vadd.f32 %v1104, 0.4994258
    %v1106 = vmul.f32 %v1086, %v1105
    %v1107 = vadd.f32 %v1106, 1.0
    %v1108 = vrcp.pop %v1107
    %v1109 = vmul.f32 %v1107, %v1108
    %v1110 = vsub.f32 1.0, %v1109
    %v1111 = vmul.f32 %v1108, %v1110
    %v1112 = vadd.f32 %v1108, %v1111
    %vm1113 = vweird.f32 %v1107
    %vm1114 = vweird.f32 %v1108
    %vm1115 = vmor %vm1113, %vm1114
    %v1116 = vsel %vm1115, %v1108, %v1112
    %v1117 = vand.u32 2147483647, %v1107
    %vm1118 = vcmp.eq.f32.partialorder %v1117, 8.507059e+37
    %v1119 = vand.u32 %v1107, 2147483648
    %v1120 = vor.u32 1.1754944e-38, %v1119
    %v1121 = vsel %vm1118, %v1120, %v1116
    %v1122 = vmul.f32 %v1097, %v1121
    %v1123 = vmin.f32 %v1122, 1.0
    %v1124 = vmax.f32 %v1123, -1.0
    %v1125 = vmul.f32 %v1031, %v1031
    %v1126 = vmin.f32 16.0, %v1125
    %v1127 = vmul.f32 %v1126, 2.1237322e-06
    %v1128 = vadd.f32 %v1127, 0.00028619796
    %v1129 = vmul.f32 %v1126, %v1128
    %v1130 = vadd.f32 %v1129, 0.0036580483
    %v1131 = vmul.f32 %v1126, %v1130
    %v1132 = vadd.f32 %v1131, 0.05243302
    %v1133 = vmul.f32 %v1126, %v1132
    %v1134 = vadd.f32 %v1133, 0.18741608
    %v1135 = vmul.f32 %v1126, %v1134
    %v1136 = vadd.f32 %v1135, 1.1283791
    %v1137 = vmul.f32 %v1031, %v1136
    %v1138 = vmul.f32 %v1126, 3.8918573e-05
    %v1139 = vadd.f32 %v1138, 0.001143296
    %v1140 = vmul.f32 %v1126, %v1139
    %v1141 = vadd.f32 %v1140, 0.014752088
    %v1142 = vmul.f32 %v1126, %v1141
    %v1143 = vadd.f32 %v1142, 0.112945676
    %v1144 = vmul.f32 %v1126, %v1143
    %v1145 = vadd.f32 %v1144, 0.4994258
    %v1146 = vmul.f32 %v1126, %v1145
    %v1147 = vadd.f32 %v1146, 1.0
    %v1148 = vrcp.pop %v1147
    %v1149 = vmul.f32 %v1147, %v1148
    %v1150 = vsub.f32 1.0, %v1149
    %v1151 = vmul.f32 %v1148, %v1150
    %v1152 = vadd.f32 %v1148, %v1151
    %vm1153 = vweird.f32 %v1147
    %vm1154 = vweird.f32 %v1148
    %vm1155 = vmor %vm1153, %vm1154
    %v1156 = vsel %vm1155, %v1148, %v1152
    %v1157 = vand.u32 2147483647, %v1147
    %vm1158 = vcmp.eq.f32.partialorder %v1157, 8.507059e+37
    %v1159 = vand.u32 %v1147, 2147483648
    %v1160 = vor.u32 1.1754944e-38, %v1159
    %v1161 = vsel %vm1158, %v1160, %v1156
    %v1162 = vmul.f32 %v1137, %v1161
    %v1163 = vmin.f32 %v1162, 1.0
    %v1164 = vmax.f32 %v1163, -1.0
    %v1165 = vmul.f32 %v1032, %v1032
    %v1166 = vmin.f32 16.0, %v1165
    %v1167 = vmul.f32 %v1166, 2.1237322e-06
    %v1168 = vadd.f32 %v1167, 0.00028619796
    %v1169 = vmul.f32 %v1166, %v1168
    %v1170 = vadd.f32 %v1169, 0.0036580483
    %v1171 = vmul.f32 %v1166, %v1170
    %v1172 = vadd.f32 %v1171, 0.05243302
    %v1173 = vmul.f32 %v1166, %v1172
    %v1174 = vadd.f32 %v1173, 0.18741608
    %v1175 = vmul.f32 %v1166, %v1174
    %v1176 = vadd.f32 %v1175, 1.1283791
    %v1177 = vmul.f32 %v1032, %v1176
    %v1178 = vmul.f32 %v1166, 3.8918573e-05
    %v1179 = vadd.f32 %v1178, 0.001143296
    %v1180 = vmul.f32 %v1166, %v1179
    %v1181 = vadd.f32 %v1180, 0.014752088
    %v1182 = vmul.f32 %v1166, %v1181
    %v1183 = vadd.f32 %v1182, 0.112945676
    %v1184 = vmul.f32 %v1166, %v1183
    %v1185 = vadd.f32 %v1184, 0.4994258
    %v1186 = vmul.f32 %v1166, %v1185
    %v1187 = vadd.f32 %v1186, 1.0
    %v1188 = vrcp.pop %v1187
    %v1189 = vmul.f32 %v1187, %v1188
    %v1190 = vsub.f32 1.0, %v1189
    %v1191 = vmul.f32 %v1188, %v1190
    %v1192 = vadd.f32 %v1188, %v1191
    %vm1193 = vweird.f32 %v1187
    %vm1194 = vweird.f32 %v1188
    %vm1195 = vmor %vm1193, %vm1194
    %v1196 = vsel %vm1195, %v1188, %v1192
    %v1197 = vand.u32 2147483647, %v1187
    %vm1198 = vcmp.eq.f32.partialorder %v1197, 8.507059e+37
    %v1199 = vand.u32 %v1187, 2147483648
    %v1200 = vor.u32 1.1754944e-38, %v1199
    %v1201 = vsel %vm1198, %v1200, %v1196
    %v1202 = vmul.f32 %v1177, %v1201
    %v1203 = vmin.f32 %v1202, 1.0
    %v1204 = vmax.f32 %v1203, -1.0
    %v1205 = vmul.f32 %v1033, %v1033
    %v1206 = vmin.f32 16.0, %v1205
    %v1207 = vmul.f32 %v1206, 2.1237322e-06
    %v1208 = vadd.f32 %v1207, 0.00028619796
    %v1209 = vmul.f32 %v1206, %v1208
    %v1210 = vadd.f32 %v1209, 0.0036580483
    %v1211 = vmul.f32 %v1206, %v1210
    %v1212 = vadd.f32 %v1211, 0.05243302
    %v1213 = vmul.f32 %v1206, %v1212
    %v1214 = vadd.f32 %v1213, 0.18741608
    %v1215 = vmul.f32 %v1206, %v1214
    %v1216 = vadd.f32 %v1215, 1.1283791
    %v1217 = vmul.f32 %v1033, %v1216
    %v1218 = vmul.f32 %v1206, 3.8918573e-05
    %v1219 = vadd.f32 %v1218, 0.001143296
    %v1220 = vmul.f32 %v1206, %v1219
    %v1221 = vadd.f32 %v1220, 0.014752088
    %v1222 = vmul.f32 %v1206, %v1221
    %v1223 = vadd.f32 %v1222, 0.112945676
    %v1224 = vmul.f32 %v1206, %v1223
    %v1225 = vadd.f32 %v1224, 0.4994258
    %v1226 = vmul.f32 %v1206, %v1225
    %v1227 = vadd.f32 %v1226, 1.0
    %v1228 = vrcp.pop %v1227
    %v1229 = vmul.f32 %v1227, %v1228
    %v1230 = vsub.f32 1.0, %v1229
    %v1231 = vmul.f32 %v1228, %v1230
    %v1232 = vadd.f32 %v1228, %v1231
    %vm1233 = vweird.f32 %v1227
    %vm1234 = vweird.f32 %v1228
    %vm1235 = vmor %vm1233, %vm1234
    %v1236 = vsel %vm1235, %v1228, %v1232
    %v1237 = vand.u32 2147483647, %v1227
    %vm1238 = vcmp.eq.f32.partialorder %v1237, 8.507059e+37
    %v1239 = vand.u32 %v1227, 2147483648
    %v1240 = vor.u32 1.1754944e-38, %v1239
    %v1241 = vsel %vm1238, %v1240, %v1236
    %v1242 = vmul.f32 %v1217, %v1241
    %v1243 = vmin.f32 %v1242, 1.0
    %v1244 = vmax.f32 %v1243, -1.0
    %v1245 = vmul.f32 %v1034, %v1034
    %v1246 = vmin.f32 16.0, %v1245
    %v1247 = vmul.f32 %v1246, 2.1237322e-06
    %v1248 = vadd.f32 %v1247, 0.00028619796
    %v1249 = vmul.f32 %v1246, %v1248
    %v1250 = vadd.f32 %v1249, 0.0036580483
    %v1251 = vmul.f32 %v1246, %v1250
    %v1252 = vadd.f32 %v1251, 0.05243302
    %v1253 = vmul.f32 %v1246, %v1252
    %v1254 = vadd.f32 %v1253, 0.18741608
    %v1255 = vmul.f32 %v1246, %v1254
    %v1256 = vadd.f32 %v1255, 1.1283791
    %v1257 = vmul.f32 %v1034, %v1256
    %v1258 = vmul.f32 %v1246, 3.8918573e-05
    %v1259 = vadd.f32 %v1258, 0.001143296
    %v1260 = vmul.f32 %v1246, %v1259
    %v1261 = vadd.f32 %v1260, 0.014752088
    %v1262 = vmul.f32 %v1246, %v1261
    %v1263 = vadd.f32 %v1262, 0.112945676
    %v1264 = vmul.f32 %v1246, %v1263
    %v1265 = vadd.f32 %v1264, 0.4994258
    %v1266 = vmul.f32 %v1246, %v1265
    %v1267 = vadd.f32 %v1266, 1.0
    %v1268 = vrcp.pop %v1267
    %v1269 = vmul.f32 %v1267, %v1268
    %v1270 = vsub.f32 1.0, %v1269
    %v1271 = vmul.f32 %v1268, %v1270
    %v1272 = vadd.f32 %v1268, %v1271
    %vm1273 = vweird.f32 %v1267
    %vm1274 = vweird.f32 %v1268
    %vm1275 = vmor %vm1273, %vm1274
    %v1276 = vsel %vm1275, %v1268, %v1272
    %v1277 = vand.u32 2147483647, %v1267
    %vm1278 = vcmp.eq.f32.partialorder %v1277, 8.507059e+37
    %v1279 = vand.u32 %v1267, 2147483648
    %v1280 = vor.u32 1.1754944e-38, %v1279
    %v1281 = vsel %vm1278, %v1280, %v1276
    %v1282 = vmul.f32 %v1257, %v1281
    %v1283 = vmin.f32 %v1282, 1.0
    %v1284 = vmax.f32 %v1283, -1.0
    %v1285 = vmul.f32 %v1035, %v1035
    %v1286 = vmin.f32 16.0, %v1285
    %v1287 = vmul.f32 %v1286, 2.1237322e-06
    %v1288 = vadd.f32 %v1287, 0.00028619796
    %v1289 = vmul.f32 %v1286, %v1288
    %v1290 = vadd.f32 %v1289, 0.0036580483
    %v1291 = vmul.f32 %v1286, %v1290
    %v1292 = vadd.f32 %v1291, 0.05243302
    %v1293 = vmul.f32 %v1286, %v1292
    %v1294 = vadd.f32 %v1293, 0.18741608
    %v1295 = vmul.f32 %v1286, %v1294
    %v1296 = vadd.f32 %v1295, 1.1283791
    %v1297 = vmul.f32 %v1035, %v1296
    %v1298 = vmul.f32 %v1286, 3.8918573e-05
    %v1299 = vadd.f32 %v1298, 0.001143296
    %v1300 = vmul.f32 %v1286, %v1299
    %v1301 = vadd.f32 %v1300, 0.014752088
    %v1302 = vmul.f32 %v1286, %v1301
    %v1303 = vadd.f32 %v1302, 0.112945676
    %v1304 = vmul.f32 %v1286, %v1303
    %v1305 = vadd.f32 %v1304, 0.4994258
    %v1306 = vmul.f32 %v1286, %v1305
    %v1307 = vadd.f32 %v1306, 1.0
    %v1308 = vrcp.pop %v1307
    %v1309 = vmul.f32 %v1307, %v1308
    %v1310 = vsub.f32 1.0, %v1309
    %v1311 = vmul.f32 %v1308, %v1310
    %v1312 = vadd.f32 %v1308, %v1311
    %vm1313 = vweird.f32 %v1307
    %vm1314 = vweird.f32 %v1308
    %vm1315 = vmor %vm1313, %vm1314
    %v1316 = vsel %vm1315, %v1308, %v1312
    %v1317 = vand.u32 2147483647, %v1307
    %vm1318 = vcmp.eq.f32.partialorder %v1317, 8.507059e+37
    %v1319 = vand.u32 %v1307, 2147483648
    %v1320 = vor.u32 1.1754944e-38, %v1319
    %v1321 = vsel %vm1318, %v1320, %v1316
    %v1322 = vmul.f32 %v1297, %v1321
    %v1323 = vmin.f32 %v1322, 1.0
    %v1324 = vmax.f32 %v1323, -1.0
    %v1325 = vmul.f32 %v1036, %v1036
    %v1326 = vmin.f32 16.0, %v1325
    %v1327 = vmul.f32 %v1326, 2.1237322e-06
    %v1328 = vadd.f32 %v1327, 0.00028619796
    %v1329 = vmul.f32 %v1326, %v1328
    %v1330 = vadd.f32 %v1329, 0.0036580483
    %v1331 = vmul.f32 %v1326, %v1330
    %v1332 = vadd.f32 %v1331, 0.05243302
    %v1333 = vmul.f32 %v1326, %v1332
    %v1334 = vadd.f32 %v1333, 0.18741608
    %v1335 = vmul.f32 %v1326, %v1334
    %v1336 = vadd.f32 %v1335, 1.1283791
    %v1337 = vmul.f32 %v1036, %v1336
    %v1338 = vmul.f32 %v1326, 3.8918573e-05
    %v1339 = vadd.f32 %v1338, 0.001143296
    %v1340 = vmul.f32 %v1326, %v1339
    %v1341 = vadd.f32 %v1340, 0.014752088
    %v1342 = vmul.f32 %v1326, %v1341
    %v1343 = vadd.f32 %v1342, 0.112945676
    %v1344 = vmul.f32 %v1326, %v1343
    %v1345 = vadd.f32 %v1344, 0.4994258
    %v1346 = vmul.f32 %v1326, %v1345
    %v1347 = vadd.f32 %v1346, 1.0
    %v1348 = vrcp.pop %v1347
    %v1349 = vmul.f32 %v1347, %v1348
    %v1350 = vsub.f32 1.0, %v1349
    %v1351 = vmul.f32 %v1348, %v1350
    %v1352 = vadd.f32 %v1348, %v1351
    %vm1353 = vweird.f32 %v1347
    %vm1354 = vweird.f32 %v1348
    %vm1355 = vmor %vm1353, %vm1354
    %v1356 = vsel %vm1355, %v1348, %v1352
    %v1357 = vand.u32 2147483647, %v1347
    %vm1358 = vcmp.eq.f32.partialorder %v1357, 8.507059e+37
    %v1359 = vand.u32 %v1347, 2147483648
    %v1360 = vor.u32 1.1754944e-38, %v1359
    %v1361 = vsel %vm1358, %v1360, %v1356
    %v1362 = vmul.f32 %v1337, %v1361
    %v1363 = vmin.f32 %v1362, 1.0
    %v1364 = vmax.f32 %v1363, -1.0
    %v1365 = vmul.f32 %v1037, %v1037
    %v1366 = vmin.f32 16.0, %v1365
    %v1367 = vmul.f32 %v1366, 2.1237322e-06
    %v1368 = vadd.f32 %v1367, 0.00028619796
    %v1369 = vmul.f32 %v1366, %v1368
    %v1370 = vadd.f32 %v1369, 0.0036580483
    %v1371 = vmul.f32 %v1366, %v1370
    %v1372 = vadd.f32 %v1371, 0.05243302
    %v1373 = vmul.f32 %v1366, %v1372
    %v1374 = vadd.f32 %v1373, 0.18741608
    %v1375 = vmul.f32 %v1366, %v1374
    %v1376 = vadd.f32 %v1375, 1.1283791
    %v1377 = vmul.f32 %v1037, %v1376
    %v1378 = vmul.f32 %v1366, 3.8918573e-05
    %v1379 = vadd.f32 %v1378, 0.001143296
    %v1380 = vmul.f32 %v1366, %v1379
    %v1381 = vadd.f32 %v1380, 0.014752088
    %v1382 = vmul.f32 %v1366, %v1381
    %v1383 = vadd.f32 %v1382, 0.112945676
    %v1384 = vmul.f32 %v1366, %v1383
    %v1385 = vadd.f32 %v1384, 0.4994258
    %v1386 = vmul.f32 %v1366, %v1385
    %v1387 = vadd.f32 %v1386, 1.0
    %v1388 = vrcp.pop %v1387
    %v1389 = vmul.f32 %v1387, %v1388
    %v1390 = vsub.f32 1.0, %v1389
    %v1391 = vmul.f32 %v1388, %v1390
    %v1392 = vadd.f32 %v1388, %v1391
    %vm1393 = vweird.f32 %v1387
    %vm1394 = vweird.f32 %v1388
    %vm1395 = vmor %vm1393, %vm1394
    %v1396 = vsel %vm1395, %v1388, %v1392
    %v1397 = vand.u32 2147483647, %v1387
    %vm1398 = vcmp.eq.f32.partialorder %v1397, 8.507059e+37
    %v1399 = vand.u32 %v1387, 2147483648
    %v1400 = vor.u32 1.1754944e-38, %v1399
    %v1401 = vsel %vm1398, %v1400, %v1396
    %v1402 = vmul.f32 %v1377, %v1401
    %v1403 = vmin.f32 %v1402, 1.0
    %v1404 = vmax.f32 %v1403, -1.0
    %v1405 = vmul.f32 %v1038, %v1038
    %v1406 = vmin.f32 16.0, %v1405
    %v1407 = vmul.f32 %v1406, 2.1237322e-06
    %v1408 = vadd.f32 %v1407, 0.00028619796
    %v1409 = vmul.f32 %v1406, %v1408
    %v1410 = vadd.f32 %v1409, 0.0036580483
    %v1411 = vmul.f32 %v1406, %v1410
    %v1412 = vadd.f32 %v1411, 0.05243302
    %v1413 = vmul.f32 %v1406, %v1412
    %v1414 = vadd.f32 %v1413, 0.18741608
    %v1415 = vmul.f32 %v1406, %v1414
    %v1416 = vadd.f32 %v1415, 1.1283791
    %v1417 = vmul.f32 %v1038, %v1416
    %v1418 = vmul.f32 %v1406, 3.8918573e-05
    %v1419 = vadd.f32 %v1418, 0.001143296
    %v1420 = vmul.f32 %v1406, %v1419
    %v1421 = vadd.f32 %v1420, 0.014752088
    %v1422 = vmul.f32 %v1406, %v1421
    %v1423 = vadd.f32 %v1422, 0.112945676
    %v1424 = vmul.f32 %v1406, %v1423
    %v1425 = vadd.f32 %v1424, 0.4994258
    %v1426 = vmul.f32 %v1406, %v1425
    %v1427 = vadd.f32 %v1426, 1.0
    %v1428 = vrcp.pop %v1427
    %v1429 = vmul.f32 %v1427, %v1428
    %v1430 = vsub.f32 1.0, %v1429
    %v1431 = vmul.f32 %v1428, %v1430
    %v1432 = vadd.f32 %v1428, %v1431
    %vm1433 = vweird.f32 %v1427
    %vm1434 = vweird.f32 %v1428
    %vm1435 = vmor %vm1433, %vm1434
    %v1436 = vsel %vm1435, %v1428, %v1432
    %v1437 = vand.u32 2147483647, %v1427
    %vm1438 = vcmp.eq.f32.partialorder %v1437, 8.507059e+37
    %v1439 = vand.u32 %v1427, 2147483648
    %v1440 = vor.u32 1.1754944e-38, %v1439
    %v1441 = vsel %vm1438, %v1440, %v1436
    %v1442 = vmul.f32 %v1417, %v1441
    %v1443 = vmin.f32 %v1442, 1.0
    %v1444 = vmax.f32 %v1443, -1.0
    %v1445 = vmul.f32 %v1039, %v1039
    %v1446 = vmin.f32 16.0, %v1445
    %v1447 = vmul.f32 %v1446, 2.1237322e-06
    %v1448 = vadd.f32 %v1447, 0.00028619796
    %v1449 = vmul.f32 %v1446, %v1448
    %v1450 = vadd.f32 %v1449, 0.0036580483
    %v1451 = vmul.f32 %v1446, %v1450
    %v1452 = vadd.f32 %v1451, 0.05243302
    %v1453 = vmul.f32 %v1446, %v1452
    %v1454 = vadd.f32 %v1453, 0.18741608
    %v1455 = vmul.f32 %v1446, %v1454
    %v1456 = vadd.f32 %v1455, 1.1283791
    %v1457 = vmul.f32 %v1039, %v1456
    %v1458 = vmul.f32 %v1446, 3.8918573e-05
    %v1459 = vadd.f32 %v1458, 0.001143296
    %v1460 = vmul.f32 %v1446, %v1459
    %v1461 = vadd.f32 %v1460, 0.014752088
    %v1462 = vmul.f32 %v1446, %v1461
    %v1463 = vadd.f32 %v1462, 0.112945676
    %v1464 = vmul.f32 %v1446, %v1463
    %v1465 = vadd.f32 %v1464, 0.4994258
    %v1466 = vmul.f32 %v1446, %v1465
    %v1467 = vadd.f32 %v1466, 1.0
    %v1468 = vrcp.pop %v1467
    %v1469 = vmul.f32 %v1467, %v1468
    %v1470 = vsub.f32 1.0, %v1469
    %v1471 = vmul.f32 %v1468, %v1470
    %v1472 = vadd.f32 %v1468, %v1471
    %vm1473 = vweird.f32 %v1467
    %vm1474 = vweird.f32 %v1468
    %vm1475 = vmor %vm1473, %vm1474
    %v1476 = vsel %vm1475, %v1468, %v1472
    %v1477 = vand.u32 2147483647, %v1467
    %vm1478 = vcmp.eq.f32.partialorder %v1477, 8.507059e+37
    %v1479 = vand.u32 %v1467, 2147483648
    %v1480 = vor.u32 1.1754944e-38, %v1479
    %v1481 = vsel %vm1478, %v1480, %v1476
    %v1482 = vmul.f32 %v1457, %v1481
    %v1483 = vmin.f32 %v1482, 1.0
    %v1484 = vmax.f32 %v1483, -1.0
    %v1485 = vmul.f32 %v1040, %v1040
    %v1486 = vmin.f32 16.0, %v1485
    %v1487 = vmul.f32 %v1486, 2.1237322e-06
    %v1488 = vadd.f32 %v1487, 0.00028619796
    %v1489 = vmul.f32 %v1486, %v1488
    %v1490 = vadd.f32 %v1489, 0.0036580483
    %v1491 = vmul.f32 %v1486, %v1490
    %v1492 = vadd.f32 %v1491, 0.05243302
    %v1493 = vmul.f32 %v1486, %v1492
    %v1494 = vadd.f32 %v1493, 0.18741608
    %v1495 = vmul.f32 %v1486, %v1494
    %v1496 = vadd.f32 %v1495, 1.1283791
    %v1497 = vmul.f32 %v1040, %v1496
    %v1498 = vmul.f32 %v1486, 3.8918573e-05
    %v1499 = vadd.f32 %v1498, 0.001143296
    %v1500 = vmul.f32 %v1486, %v1499
    %v1501 = vadd.f32 %v1500, 0.014752088
    %v1502 = vmul.f32 %v1486, %v1501
    %v1503 = vadd.f32 %v1502, 0.112945676
    %v1504 = vmul.f32 %v1486, %v1503
    %v1505 = vadd.f32 %v1504, 0.4994258
    %v1506 = vmul.f32 %v1486, %v1505
    %v1507 = vadd.f32 %v1506, 1.0
    %v1508 = vrcp.pop %v1507
    %v1509 = vmul.f32 %v1507, %v1508
    %v1510 = vsub.f32 1.0, %v1509
    %v1511 = vmul.f32 %v1508, %v1510
    %v1512 = vadd.f32 %v1508, %v1511
    %vm1513 = vweird.f32 %v1507
    %vm1514 = vweird.f32 %v1508
    %vm1515 = vmor %vm1513, %vm1514
    %v1516 = vsel %vm1515, %v1508, %v1512
    %v1517 = vand.u32 2147483647, %v1507
    %vm1518 = vcmp.eq.f32.partialorder %v1517, 8.507059e+37
    %v1519 = vand.u32 %v1507, 2147483648
    %v1520 = vor.u32 1.1754944e-38, %v1519
    %v1521 = vsel %vm1518, %v1520, %v1516
    %v1522 = vmul.f32 %v1497, %v1521
    %v1523 = vmin.f32 %v1522, 1.0
    %v1524 = vmax.f32 %v1523, -1.0
    %v1525 = vmul.f32 %v1041, %v1041
    %v1526 = vmin.f32 16.0, %v1525
    %v1527 = vmul.f32 %v1526, 2.1237322e-06
    %v1528 = vadd.f32 %v1527, 0.00028619796
    %v1529 = vmul.f32 %v1526, %v1528
    %v1530 = vadd.f32 %v1529, 0.0036580483
    %v1531 = vmul.f32 %v1526, %v1530
    %v1532 = vadd.f32 %v1531, 0.05243302
    %v1533 = vmul.f32 %v1526, %v1532
    %v1534 = vadd.f32 %v1533, 0.18741608
    %v1535 = vmul.f32 %v1526, %v1534
    %v1536 = vadd.f32 %v1535, 1.1283791
    %v1537 = vmul.f32 %v1041, %v1536
    %v1538 = vmul.f32 %v1526, 3.8918573e-05
    %v1539 = vadd.f32 %v1538, 0.001143296
    %v1540 = vmul.f32 %v1526, %v1539
    %v1541 = vadd.f32 %v1540, 0.014752088
    %v1542 = vmul.f32 %v1526, %v1541
    %v1543 = vadd.f32 %v1542, 0.112945676
    %v1544 = vmul.f32 %v1526, %v1543
    %v1545 = vadd.f32 %v1544, 0.4994258
    %v1546 = vmul.f32 %v1526, %v1545
    %v1547 = vadd.f32 %v1546, 1.0
    %v1548 = vrcp.pop %v1547
    %v1549 = vmul.f32 %v1547, %v1548
    %v1550 = vsub.f32 1.0, %v1549
    %v1551 = vmul.f32 %v1548, %v1550
    %v1552 = vadd.f32 %v1548, %v1551
    %vm1553 = vweird.f32 %v1547
    %vm1554 = vweird.f32 %v1548
    %vm1555 = vmor %vm1553, %vm1554
    %v1556 = vsel %vm1555, %v1548, %v1552
    %v1557 = vand.u32 2147483647, %v1547
    %vm1558 = vcmp.eq.f32.partialorder %v1557, 8.507059e+37
    %v1559 = vand.u32 %v1547, 2147483648
    %v1560 = vor.u32 1.1754944e-38, %v1559
    %v1561 = vsel %vm1558, %v1560, %v1556
    %v1562 = vmul.f32 %v1537, %v1561
    %v1563 = vmin.f32 %v1562, 1.0
    %v1564 = vmax.f32 %v1563, -1.0
    %v1565 = vmul.f32 %v1042, %v1042
    %v1566 = vmin.f32 16.0, %v1565
    %v1567 = vmul.f32 %v1566, 2.1237322e-06
    %v1568 = vadd.f32 %v1567, 0.00028619796
    %v1569 = vmul.f32 %v1566, %v1568
    %v1570 = vadd.f32 %v1569, 0.0036580483
    %v1571 = vmul.f32 %v1566, %v1570
    %v1572 = vadd.f32 %v1571, 0.05243302
    %v1573 = vmul.f32 %v1566, %v1572
    %v1574 = vadd.f32 %v1573, 0.18741608
    %v1575 = vmul.f32 %v1566, %v1574
    %v1576 = vadd.f32 %v1575, 1.1283791
    %v1577 = vmul.f32 %v1042, %v1576
    %v1578 = vmul.f32 %v1566, 3.8918573e-05
    %v1579 = vadd.f32 %v1578, 0.001143296
    %v1580 = vmul.f32 %v1566, %v1579
    %v1581 = vadd.f32 %v1580, 0.014752088
    %v1582 = vmul.f32 %v1566, %v1581
    %v1583 = vadd.f32 %v1582, 0.112945676
    %v1584 = vmul.f32 %v1566, %v1583
    %v1585 = vadd.f32 %v1584, 0.4994258
    %v1586 = vmul.f32 %v1566, %v1585
    %v1587 = vadd.f32 %v1586, 1.0
    %v1588 = vrcp.pop %v1587
    %v1589 = vmul.f32 %v1587, %v1588
    %v1590 = vsub.f32 1.0, %v1589
    %v1591 = vmul.f32 %v1588, %v1590
    %v1592 = vadd.f32 %v1588, %v1591
    %vm1593 = vweird.f32 %v1587
    %vm1594 = vweird.f32 %v1588
    %vm1595 = vmor %vm1593, %vm1594
    %v1596 = vsel %vm1595, %v1588, %v1592
    %v1597 = vand.u32 2147483647, %v1587
    %vm1598 = vcmp.eq.f32.partialorder %v1597, 8.507059e+37
    %v1599 = vand.u32 %v1587, 2147483648
    %v1600 = vor.u32 1.1754944e-38, %v1599
    %v1601 = vsel %vm1598, %v1600, %v1596
    %v1602 = vmul.f32 %v1577, %v1601
    %v1603 = vmin.f32 %v1602, 1.0
    %v1604 = vmax.f32 %v1603, -1.0
    %v1605 = vmul.f32 %v1043, %v1043
    %v1606 = vmin.f32 16.0, %v1605
    %v1607 = vmul.f32 %v1606, 2.1237322e-06
    %v1608 = vadd.f32 %v1607, 0.00028619796
    %v1609 = vmul.f32 %v1606, %v1608
    %v1610 = vadd.f32 %v1609, 0.0036580483
    %v1611 = vmul.f32 %v1606, %v1610
    %v1612 = vadd.f32 %v1611, 0.05243302
    %v1613 = vmul.f32 %v1606, %v1612
    %v1614 = vadd.f32 %v1613, 0.18741608
    %v1615 = vmul.f32 %v1606, %v1614
    %v1616 = vadd.f32 %v1615, 1.1283791
    %v1617 = vmul.f32 %v1043, %v1616
    %v1618 = vmul.f32 %v1606, 3.8918573e-05
    %v1619 = vadd.f32 %v1618, 0.001143296
    %v1620 = vmul.f32 %v1606, %v1619
    %v1621 = vadd.f32 %v1620, 0.014752088
    %v1622 = vmul.f32 %v1606, %v1621
    %v1623 = vadd.f32 %v1622, 0.112945676
    %v1624 = vmul.f32 %v1606, %v1623
    %v1625 = vadd.f32 %v1624, 0.4994258
    %v1626 = vmul.f32 %v1606, %v1625
    %v1627 = vadd.f32 %v1626, 1.0
    %v1628 = vrcp.pop %v1627
    %v1629 = vmul.f32 %v1627, %v1628
    %v1630 = vsub.f32 1.0, %v1629
    %v1631 = vmul.f32 %v1628, %v1630
    %v1632 = vadd.f32 %v1628, %v1631
    %vm1633 = vweird.f32 %v1627
    %vm1634 = vweird.f32 %v1628
    %vm1635 = vmor %vm1633, %vm1634
    %v1636 = vsel %vm1635, %v1628, %v1632
    %v1637 = vand.u32 2147483647, %v1627
    %vm1638 = vcmp.eq.f32.partialorder %v1637, 8.507059e+37
    %v1639 = vand.u32 %v1627, 2147483648
    %v1640 = vor.u32 1.1754944e-38, %v1639
    %v1641 = vsel %vm1638, %v1640, %v1636
    %v1642 = vmul.f32 %v1617, %v1641
    %v1643 = vmin.f32 %v1642, 1.0
    %v1644 = vmax.f32 %v1643, -1.0
    %v1645 = vmul.f32 %v1044, %v1044
    %v1646 = vmin.f32 16.0, %v1645
    %v1647 = vmul.f32 %v1646, 2.1237322e-06
    %v1648 = vadd.f32 %v1647, 0.00028619796
    %v1649 = vmul.f32 %v1646, %v1648
    %v1650 = vadd.f32 %v1649, 0.0036580483
    %v1651 = vmul.f32 %v1646, %v1650
    %v1652 = vadd.f32 %v1651, 0.05243302
    %v1653 = vmul.f32 %v1646, %v1652
    %v1654 = vadd.f32 %v1653, 0.18741608
    %v1655 = vmul.f32 %v1646, %v1654
    %v1656 = vadd.f32 %v1655, 1.1283791
    %v1657 = vmul.f32 %v1044, %v1656
    %v1658 = vmul.f32 %v1646, 3.8918573e-05
    %v1659 = vadd.f32 %v1658, 0.001143296
    %v1660 = vmul.f32 %v1646, %v1659
    %v1661 = vadd.f32 %v1660, 0.014752088
    %v1662 = vmul.f32 %v1646, %v1661
    %v1663 = vadd.f32 %v1662, 0.112945676
    %v1664 = vmul.f32 %v1646, %v1663
    %v1665 = vadd.f32 %v1664, 0.4994258
    %v1666 = vmul.f32 %v1646, %v1665
    %v1667 = vadd.f32 %v1666, 1.0
    %v1668 = vrcp.pop %v1667
    %v1669 = vmul.f32 %v1667, %v1668
    %v1670 = vsub.f32 1.0, %v1669
    %v1671 = vmul.f32 %v1668, %v1670
    %v1672 = vadd.f32 %v1668, %v1671
    %vm1673 = vweird.f32 %v1667
    %vm1674 = vweird.f32 %v1668
    %vm1675 = vmor %vm1673, %vm1674
    %v1676 = vsel %vm1675, %v1668, %v1672
    %v1677 = vand.u32 2147483647, %v1667
    %vm1678 = vcmp.eq.f32.partialorder %v1677, 8.507059e+37
    %v1679 = vand.u32 %v1667, 2147483648
    %v1680 = vor.u32 1.1754944e-38, %v1679
    %v1681 = vsel %vm1678, %v1680, %v1676
    %v1682 = vmul.f32 %v1657, %v1681
    %v1683 = vmin.f32 %v1682, 1.0
    %v1684 = vmax.f32 %v1683, -1.0
    %v1685 = vadd.f32 %v1084, 1.0
    %v1686 = vadd.f32 %v1124, 1.0
    %v1687 = vadd.f32 %v1164, 1.0
    %v1688 = vadd.f32 %v1204, 1.0
    %v1689 = vadd.f32 %v1244, 1.0
    %v1690 = vadd.f32 %v1284, 1.0
    %v1691 = vadd.f32 %v1324, 1.0
    %v1692 = vadd.f32 %v1364, 1.0
    %v1693 = vadd.f32 %v1404, 1.0
    %v1694 = vadd.f32 %v1444, 1.0
    %v1695 = vadd.f32 %v1484, 1.0
    %v1696 = vadd.f32 %v1524, 1.0
    %v1697 = vadd.f32 %v1564, 1.0
    %v1698 = vadd.f32 %v1604, 1.0
    %v1699 = vadd.f32 %v1644, 1.0
    %v1700 = vadd.f32 %v1684, 1.0
    %v1701 = vmul.f32 %v1013, %v1685
    %v1702 = vmul.f32 %v1014, %v1686
    %v1703 = vmul.f32 %v1015, %v1687
    %v1704 = vmul.f32 %v1016, %v1688
    %v1705 = vmul.f32 %v1017, %v1689
    %v1706 = vmul.f32 %v1018, %v1690
    %v1707 = vmul.f32 %v1019, %v1691
    %v1708 = vmul.f32 %v1020, %v1692
    %v1709 = vmul.f32 %v1021, %v1693
    %v1710 = vmul.f32 %v1022, %v1694
    %v1711 = vmul.f32 %v1023, %v1695
    %v1712 = vmul.f32 %v1024, %v1696
    %v1713 = vmul.f32 %v1025, %v1697
    %v1714 = vmul.f32 %v1026, %v1698
    %v1715 = vmul.f32 %v1027, %v1699
    %v1716 = vmul.f32 %v1028, %v1700
    %1717 = vst [vmem:[%s5] sm:$0xff] %v1701
    %1718 = vst [vmem:[%s5 + $0x8] sm:$0xff] %v1702
    %1719 = vst [vmem:[%s5 + $0x10] sm:$0xff] %v1703
    %1720 = vst [vmem:[%s5 + $0x18] sm:$0xff] %v1704
    %1721 = vst [vmem:[%s5 + $0x20] sm:$0xff] %v1705
    %1722 = vst [vmem:[%s5 + $0x28] sm:$0xff] %v1706
    %1723 = vst [vmem:[%s5 + $0x30] sm:$0xff] %v1707
    %1724 = vst [vmem:[%s5 + $0x38] sm:$0xff] %v1708
    %1725 = vst [vmem:[%s5 + $0x40] sm:$0xff] %v1709
    %1726 = vst [vmem:[%s5 + $0x48] sm:$0xff] %v1710
    %1727 = vst [vmem:[%s5 + $0x50] sm:$0xff] %v1711
    %1728 = vst [vmem:[%s5 + $0x58] sm:$0xff] %v1712
    %1729 = vst [vmem:[%s5 + $0x60] sm:$0xff] %v1713
    %1730 = vst [vmem:[%s5 + $0x68] sm:$0xff] %v1714
    %1731 = vst [vmem:[%s5 + $0x70] sm:$0xff] %v1715
    %1732 = vst [vmem:[%s5 + $0x78] sm:$0xff] %v1716
  $region29: #{linear_block.1} parent=0 // pred_fallthru
    _
  // Predicated region
  $region30: #{linear_block.1} parent=0 // pred_check
    _
  $region31: #{linear_block.1} parent=0 // pred_check_branch
    %1734 = sbr.rel (0) target = $region33
  $region32: #{linear_block.1} parent=0 // pred_region
    _
  $region33: #{linear_block.1} parent=0 // pred_fallthru
    _
  // Predicated region
  $region34: #{linear_block.1} parent=0 // pred_check
    _
  $region35: #{linear_block.1} parent=0 // pred_check_branch
    %1736 = sbr.rel (0) target = $region37
  $region36: #{linear_block.1} parent=0 // pred_region
    _
  $region37: #{linear_block.1} parent=0 // pred_fallthru
    _

</llo_original>
